<compile_context>
chip_gen: v6e
topology: v6e:2x2x1
jax: 0.10.0
libtpu: 0.0.40
codegen_flags: <defaults>
</compile_context>

<pallas_src>
import functools

import numpy as np

import jax
import jax.numpy as jnp
from jax import lax
from jax.experimental import pallas as pl
from jax.experimental.pallas import tpu as pltpu


# ----------------------------------------------------------------------------
# Fused Pallas kernel: encoder -> pooled pyramid level -> decoder -> town
#                      -> regress_town -> four heads (lane-dense 128-wide slab)
# ----------------------------------------------------------------------------
def _centernet_fused_kernel(x_ref, pt_ref,
                            we_ref, be_ref,
                            wd_ref, bd_ref,
                            wt_ref, bt_ref,
                            wrt_ref, brt_ref,
                            whm_ref, wrdc_ref, bh_ref,
                            o_ref, *, num_classes):
    """Whole post-transpose CenterNet chain in one VMEM-resident block.

    Output slab columns (CPAD = 128 lanes, lane-dense unmasked store):
      [0, nc)        heatmap(town_out)          (sigmoid applied below)
      [nc, nc+2)     reg(regress_out)           (1/2**used_layer folded into W/b)
      [nc+2, nc+5)   dwh(regress_out)
      [nc+5, 2nc+5)  classify(regress_out)
      [2nc+5, 128)   zero padding (sliced off by the wrapper)
    """
    f32 = jnp.float32

    # encoder stem: 1x1 conv + relu at full resolution
    e = jnp.dot(x_ref[...], we_ref[...], preferred_element_type=f32)
    e = jnp.maximum(e + be_ref[...], 0.0)

    # `sel` 2x2 AvgPool(stride 2, floor) steps folded into one constant pooling
    # matrix -> a single MXU matmul.  (Avoids in-kernel reshapes that cross
    # (8,128) tiles and strided sublane gathers at this tiny size.)
    p = jnp.dot(pt_ref[...], e.astype(pt_ref.dtype), preferred_element_type=f32)

    # decoder level: 1x1 conv + relu
    d = jnp.dot(p.astype(wd_ref.dtype), wd_ref[...], preferred_element_type=f32)
    d = jnp.maximum(d + bd_ref[...], 0.0)

    # town: 1x1 conv + relu
    t = jnp.dot(d.astype(wt_ref.dtype), wt_ref[...], preferred_element_type=f32)
    t = jnp.maximum(t + bt_ref[...], 0.0)

    # regress_town: 1x1 conv + relu
    r = jnp.dot(t.astype(wrt_ref.dtype), wrt_ref[...], preferred_element_type=f32)
    r = jnp.maximum(r + brt_ref[...], 0.0)

    # four heads -> one lane-dense 128-wide accumulator (two matmuls, one store)
    slab = jnp.dot(t.astype(whm_ref.dtype), whm_ref[...], preferred_element_type=f32)
    slab = slab + jnp.dot(r.astype(wrdc_ref.dtype), wrdc_ref[...],
                          preferred_element_type=f32)
    slab = slab + bh_ref[...]

    # exact sigmoid (torch.sigmoid parity) on the heatmap lanes only
    col = lax.broadcasted_iota(jnp.int32, slab.shape, 1)
    sig = 1.0 / (1.0 + jnp.exp(-slab))
    slab = jnp.where(col < num_classes, sig, slab)

    # TODO(synk): for real image sizes store bf16 here (the f32 slab writeback
    # dominates HBM traffic once M is large) and add a 'parallel' M grid.
    o_ref[...] = slab.astype(o_ref.dtype)


# ----------------------------------------------------------------------------
# Compile-time helpers
# ----------------------------------------------------------------------------
def _round_up(x, m):
    return ((x + m - 1) // m) * m


def _build_pool_matrix(n, h, w, levels):
    """Compile-time (numpy) pooling operator Pt with pooled_flat = Pt @ flat.

    Rows/cols index NHWC row-major flattened pixels.  Matches PyTorch
    nn.AvgPool2d(kernel_size=2, stride=2): floor output size, the trailing odd
    row/col is dropped.  Composes `levels` pools (identity when levels == 0).
    """
    m = n * h * w
    pt = np.eye(m, dtype=np.float32)
    ch, cw = h, w
    for _ in range(levels):
        ho, wo = ch // 2, cw // 2
        step = np.zeros((n * ho * wo, n * ch * cw), np.float32)
        for b in range(n):
            for i in range(ho):
                for j in range(wo):
                    row = (b * ho + i) * wo + j
                    for di in range(2):
                        for dj in range(2):
                            col = (b * ch + 2 * i + di) * cw + 2 * j + dj
                            step[row, col] = 0.25
        pt = step @ pt
        ch, cw = ho, wo
    return pt, ch, cw


# ----------------------------------------------------------------------------
# Deterministic parameter construction (synthetic; no checkpoint load)
# ----------------------------------------------------------------------------
def _init_linear(key, cin, cout, dtype=jnp.float32):
    kw, kb = jax.random.split(key)
    w = jax.random.normal(kw, (cin, cout), dtype) * (1.0 / jnp.sqrt(cin))
    b = jax.random.normal(kb, (1, cout), dtype) * 0.01
    return w, b


def make_centernet_params(key, c_in, c_enc, c_dec, c_town, num_classes, num_levels):
    keys = jax.random.split(key, 8 + num_levels)
    k = iter(keys)
    return {
        "encoder": _init_linear(next(k), c_in, c_enc),
        "decoder": [_init_linear(next(k), c_enc, c_dec) for _ in range(num_levels)],
        "town": _init_linear(next(k), c_dec, c_town),
        "regress_town": _init_linear(next(k), c_town, c_town),
        "heatmap": _init_linear(next(k), c_town, num_classes),
        "reg": _init_linear(next(k), c_town, 2),
        "dwh": _init_linear(next(k), c_town, 3),
        "classify": _init_linear(next(k), c_town, num_classes),
    }


def prepare_centernet_params(params, config):
    """One-time parameter preparation, hoisted out of the per-call forward:
    bf16 weight casts, f32 bias casts, head-slab packing, reg-scale folding."""
    bf, f32 = jnp.bfloat16, jnp.float32

    used_layer = config["town"]["used_layer"]
    num_levels = len(params["decoder"])
    sel = num_levels - used_layer - 1            # pyramid level feeding the head
    assert 0 <= sel < num_levels

    nc = params["heatmap"][0].shape[1]
    c_town = params["town"][0].shape[1]
    n_head = 2 * nc + 5
    cpad = pl.cdiv(n_head, 128) * 128
    scale = 1.0 / (2 ** used_layer)              # reg = reg_head(fm) / 2**used_layer

    w_hm, b_hm = params["heatmap"]
    w_reg, b_reg = params["reg"]
    w_dwh, b_dwh = params["dwh"]
    w_cls, b_cls = params["classify"]

    whm = jnp.zeros((c_town, cpad), f32).at[:, :nc].set(w_hm)
    wrdc = (jnp.zeros((c_town, cpad), f32)
            .at[:, nc:nc + 2].set(w_reg * scale)
            .at[:, nc + 2:nc + 5].set(w_dwh)
            .at[:, nc + 5:nc + 5 + nc].set(w_cls))
    bh = (jnp.zeros((1, cpad), f32)
          .at[:, :nc].set(b_hm)
          .at[:, nc:nc + 2].set(b_reg * scale)
          .at[:, nc + 2:nc + 5].set(b_dwh)
          .at[:, nc + 5:nc + 5 + nc].set(b_cls))

    we, be = params["encoder"]
    wd, bd = params["decoder"][sel]
    wt, bt = params["town"]
    wrt, brt = params["regress_town"]

    prep = {
        "encoder": (we.astype(bf), be.astype(f32)),
        "decoder_sel": (wd.astype(bf), bd.astype(f32)),
        "town": (wt.astype(bf), bt.astype(f32)),
        "regress_town": (wrt.astype(bf), brt.astype(f32)),
        "heads": (whm.astype(bf), wrdc.astype(bf), bh.astype(f32)),
    }
    meta = {"sel": sel, "num_classes": nc, "n_head": n_head, "cpad": cpad}
    return prep, meta


# ----------------------------------------------------------------------------
# CenterNet.forward
# ----------------------------------------------------------------------------
def centernet_forward(prep, x, *, meta):
    # if input.ndim == 4: input = input.unsqueeze(1)
    if x.ndim == 4:
        x = x[:, None]                                   # (N, 1, C, H, W)
    assert x.ndim == 5
    N, D, C, H, W = x.shape

    sel = meta["sel"]
    nc = meta["num_classes"]
    n_head = meta["n_head"]
    cpad = meta["cpad"]

    we, be = prep["encoder"]
    wd, bd = prep["decoder_sel"]
    wt, bt = prep["town"]
    wrt, brt = prep["regress_town"]
    whm, wrdc, bh = prep["heads"]

    # single NCHW -> NHWC transpose; channels stay on the lane axis from here on
    x2d = jnp.transpose(x.reshape(N, D * C, H, W), (0, 2, 3, 1)).reshape(
        N * H * W, D * C)

    # compile-time constant pooling operator (AvgPool2d(2,2), floor semantics)
    pool_np, h_out, w_out = _build_pool_matrix(N, H, W, sel)
    m_in, m_out = N * H * W, N * h_out * w_out

    # bf16 sublane packing: pad row counts to multiples of 16
    mp_in, mp_out = _round_up(m_in, 16), _round_up(m_out, 16)
    if mp_in != m_in:
        x2d = jnp.pad(x2d, ((0, mp_in - m_in), (0, 0)))
    pool_pad = np.zeros((mp_out, mp_in), np.float32)
    pool_pad[:m_out, :m_in] = pool_np
    pool_t = jnp.asarray(pool_pad).astype(jnp.bfloat16)   # trace-time constant

    # --- the whole network: ONE pallas_call, everything VMEM-resident --------
    vmem = pl.BlockSpec(memory_space=pltpu.MemorySpace.VMEM)
    slab = pl.pallas_call(
        functools.partial(_centernet_fused_kernel, num_classes=nc),
        out_shape=jax.ShapeDtypeStruct((mp_out, cpad), jnp.float32),
        in_specs=[vmem] * 13,
        out_specs=vmem,
    )(x2d.astype(jnp.bfloat16), pool_t,
      we, be, wd, bd, wt, bt, wrt, brt, whm, wrdc, bh)

    # slice to the 2*nc+5 useful lanes BEFORE the NHWC -> NCHW transpose
    y = jnp.transpose(
        slab[:m_out, :n_head].reshape(N, h_out, w_out, n_head), (0, 3, 1, 2))
    return {
        "heatmap": y[:, :nc],
        "reg": y[:, nc:nc + 2],
        "dwh": y[:, nc + 2:nc + 5],
        "classify": y[:, nc + 5:nc + 5 + nc],
    }


# ----------------------------------------------------------------------------
if __name__ == "__main__":
    key = jax.random.PRNGKey(0)
    kx, kp = jax.random.split(key)

    # small shapes consistent with the module's forward (NCHW image batch)
    N, C, H, W = 2, 4, 16, 16
    x = jax.random.normal(kx, (N, C, H, W), jnp.float32)

    config = {"town": {"used_layer": 1}}
    num_levels = 3
    params = make_centernet_params(
        kp, c_in=1 * C, c_enc=16, c_dec=16, c_town=32,
        num_classes=5, num_levels=num_levels,
    )

    # one-time parameter preparation (casts + head-slab packing + scale folding)
    prep, meta = prepare_centernet_params(params, config)

    fwd = jax.jit(functools.partial(centernet_forward, meta=meta))
    preds = fwd(prep, x)
    preds = jax.block_until_ready(preds)

    # basic shape sanity (used_layer=1 -> head runs at stride 2: 8x8 maps)
    assert preds["heatmap"].shape == (N, 5, 8, 8)
    assert preds["reg"].shape == (N, 2, 8, 8)
    assert preds["dwh"].shape == (N, 3, 8, 8)
    assert preds["classify"].shape == (N, 5, 8, 8)

    print("KERNEL_OK")
</pallas_src>

<mosaic_0001>
module attributes {stable_mosaic.version = 11 : i64} {
  func.func @_centernet_fused_kernel(%arg0: memref<512x4xbf16, #tpu.memory_space<vmem>>, %arg1: memref<128x512xbf16, #tpu.memory_space<vmem>>, %arg2: memref<4x16xbf16, #tpu.memory_space<vmem>>, %arg3: memref<1x16xf32, #tpu.memory_space<vmem>>, %arg4: memref<16x16xbf16, #tpu.memory_space<vmem>>, %arg5: memref<1x16xf32, #tpu.memory_space<vmem>>, %arg6: memref<16x32xbf16, #tpu.memory_space<vmem>>, %arg7: memref<1x32xf32, #tpu.memory_space<vmem>>, %arg8: memref<32x32xbf16, #tpu.memory_space<vmem>>, %arg9: memref<1x32xf32, #tpu.memory_space<vmem>>, %arg10: memref<32x128xbf16, #tpu.memory_space<vmem>>, %arg11: memref<32x128xbf16, #tpu.memory_space<vmem>>, %arg12: memref<1x128xf32, #tpu.memory_space<vmem>>, %arg13: memref<128x128xf32, #tpu.memory_space<vmem>>) attributes {dimension_semantics = [], scalar_prefetch = 0 : i64, scratch_operands = 0 : i64, tpu.core_type = #tpu.core_type<tc>} {
    %c0 = arith.constant 0 : index
    %c0_0 = arith.constant 0 : index
    %0 = vector.load %arg0[%c0, %c0_0] : memref<512x4xbf16, #tpu.memory_space<vmem>>, vector<512x4xbf16>
    %c0_1 = arith.constant 0 : index
    %c0_2 = arith.constant 0 : index
    %1 = vector.load %arg2[%c0_1, %c0_2] : memref<4x16xbf16, #tpu.memory_space<vmem>>, vector<4x16xbf16>
    %cst = arith.constant dense<0.000000e+00> : vector<512x16xf32>
    %2 = tpu.matmul %0, %1, %cst {dimension_numbers = #tpu.dot_dimension_numbers<[1], [0], [0], [1], [0, 0, 1, 1], [], []>} : vector<512x4xbf16>, vector<4x16xbf16>, vector<512x16xf32> -> vector<512x16xf32>
    %c0_3 = arith.constant 0 : index
    %c0_4 = arith.constant 0 : index
    %3 = vector.load %arg3[%c0_3, %c0_4] : memref<1x16xf32, #tpu.memory_space<vmem>>, vector<1x16xf32>
    %4 = vector.broadcast %3 : vector<1x16xf32> to vector<512x16xf32>
    %5 = arith.addf %2, %4 : vector<512x16xf32>
    %cst_5 = arith.constant 0.000000e+00 : f32
    %6 = vector.broadcast %cst_5 : f32 to vector<512x16xf32>
    %7 = arith.maximumf %5, %6 : vector<512x16xf32>
    %c0_6 = arith.constant 0 : index
    %c0_7 = arith.constant 0 : index
    %8 = vector.load %arg1[%c0_6, %c0_7] : memref<128x512xbf16, #tpu.memory_space<vmem>>, vector<128x512xbf16>
    %9 = arith.truncf %7 : vector<512x16xf32> to vector<512x16xbf16>
    %cst_8 = arith.constant dense<0.000000e+00> : vector<128x16xf32>
    %10 = tpu.matmul %8, %9, %cst_8 {dimension_numbers = #tpu.dot_dimension_numbers<[1], [0], [0], [1], [0, 0, 1, 1], [], []>} : vector<128x512xbf16>, vector<512x16xbf16>, vector<128x16xf32> -> vector<128x16xf32>
    %11 = arith.truncf %10 : vector<128x16xf32> to vector<128x16xbf16>
    %c0_9 = arith.constant 0 : index
    %c0_10 = arith.constant 0 : index
    %12 = vector.load %arg4[%c0_9, %c0_10] : memref<16x16xbf16, #tpu.memory_space<vmem>>, vector<16x16xbf16>
    %cst_11 = arith.constant dense<0.000000e+00> : vector<128x16xf32>
    %13 = tpu.matmul %11, %12, %cst_11 {dimension_numbers = #tpu.dot_dimension_numbers<[1], [0], [0], [1], [0, 0, 1, 1], [], []>} : vector<128x16xbf16>, vector<16x16xbf16>, vector<128x16xf32> -> vector<128x16xf32>
    %c0_12 = arith.constant 0 : index
    %c0_13 = arith.constant 0 : index
    %14 = vector.load %arg5[%c0_12, %c0_13] : memref<1x16xf32, #tpu.memory_space<vmem>>, vector<1x16xf32>
    %15 = vector.broadcast %14 : vector<1x16xf32> to vector<128x16xf32>
    %16 = arith.addf %13, %15 : vector<128x16xf32>
    %cst_14 = arith.constant 0.000000e+00 : f32
    %17 = vector.broadcast %cst_14 : f32 to vector<128x16xf32>
    %18 = arith.maximumf %16, %17 : vector<128x16xf32>
    %19 = arith.truncf %18 : vector<128x16xf32> to vector<128x16xbf16>
    %c0_15 = arith.constant 0 : index
    %c0_16 = arith.constant 0 : index
    %20 = vector.load %arg6[%c0_15, %c0_16] : memref<16x32xbf16, #tpu.memory_space<vmem>>, vector<16x32xbf16>
    %cst_17 = arith.constant dense<0.000000e+00> : vector<128x32xf32>
    %21 = tpu.matmul %19, %20, %cst_17 {dimension_numbers = #tpu.dot_dimension_numbers<[1], [0], [0], [1], [0, 0, 1, 1], [], []>} : vector<128x16xbf16>, vector<16x32xbf16>, vector<128x32xf32> -> vector<128x32xf32>
    %c0_18 = arith.constant 0 : index
    %c0_19 = arith.constant 0 : index
    %22 = vector.load %arg7[%c0_18, %c0_19] : memref<1x32xf32, #tpu.memory_space<vmem>>, vector<1x32xf32>
    %23 = vector.broadcast %22 : vector<1x32xf32> to vector<128x32xf32>
    %24 = arith.addf %21, %23 : vector<128x32xf32>
    %cst_20 = arith.constant 0.000000e+00 : f32
    %25 = vector.broadcast %cst_20 : f32 to vector<128x32xf32>
    %26 = arith.maximumf %24, %25 : vector<128x32xf32>
    %27 = arith.truncf %26 : vector<128x32xf32> to vector<128x32xbf16>
    %c0_21 = arith.constant 0 : index
    %c0_22 = arith.constant 0 : index
    %28 = vector.load %arg8[%c0_21, %c0_22] : memref<32x32xbf16, #tpu.memory_space<vmem>>, vector<32x32xbf16>
    %cst_23 = arith.constant dense<0.000000e+00> : vector<128x32xf32>
    %29 = tpu.matmul %27, %28, %cst_23 {dimension_numbers = #tpu.dot_dimension_numbers<[1], [0], [0], [1], [0, 0, 1, 1], [], []>} : vector<128x32xbf16>, vector<32x32xbf16>, vector<128x32xf32> -> vector<128x32xf32>
    %c0_24 = arith.constant 0 : index
    %c0_25 = arith.constant 0 : index
    %30 = vector.load %arg9[%c0_24, %c0_25] : memref<1x32xf32, #tpu.memory_space<vmem>>, vector<1x32xf32>
    %31 = vector.broadcast %30 : vector<1x32xf32> to vector<128x32xf32>
    %32 = arith.addf %29, %31 : vector<128x32xf32>
    %cst_26 = arith.constant 0.000000e+00 : f32
    %33 = vector.broadcast %cst_26 : f32 to vector<128x32xf32>
    %34 = arith.maximumf %32, %33 : vector<128x32xf32>
    %35 = arith.truncf %26 : vector<128x32xf32> to vector<128x32xbf16>
    %c0_27 = arith.constant 0 : index
    %c0_28 = arith.constant 0 : index
    %36 = vector.load %arg10[%c0_27, %c0_28] : memref<32x128xbf16, #tpu.memory_space<vmem>>, vector<32x128xbf16>
    %cst_29 = arith.constant dense<0.000000e+00> : vector<128x128xf32>
    %37 = tpu.matmul %35, %36, %cst_29 {dimension_numbers = #tpu.dot_dimension_numbers<[1], [0], [0], [1], [0, 0, 1, 1], [], []>} : vector<128x32xbf16>, vector<32x128xbf16>, vector<128x128xf32> -> vector<128x128xf32>
    %38 = arith.truncf %34 : vector<128x32xf32> to vector<128x32xbf16>
    %c0_30 = arith.constant 0 : index
    %c0_31 = arith.constant 0 : index
    %39 = vector.load %arg11[%c0_30, %c0_31] : memref<32x128xbf16, #tpu.memory_space<vmem>>, vector<32x128xbf16>
    %cst_32 = arith.constant dense<0.000000e+00> : vector<128x128xf32>
    %40 = tpu.matmul %38, %39, %cst_32 {dimension_numbers = #tpu.dot_dimension_numbers<[1], [0], [0], [1], [0, 0, 1, 1], [], []>} : vector<128x32xbf16>, vector<32x128xbf16>, vector<128x128xf32> -> vector<128x128xf32>
    %41 = arith.addf %37, %40 : vector<128x128xf32>
    %c0_33 = arith.constant 0 : index
    %c0_34 = arith.constant 0 : index
    %42 = vector.load %arg12[%c0_33, %c0_34] : memref<1x128xf32, #tpu.memory_space<vmem>>, vector<1x128xf32>
    %43 = vector.broadcast %42 : vector<1x128xf32> to vector<128x128xf32>
    %44 = arith.addf %41, %43 : vector<128x128xf32>
    %45 = tpu.iota {dimensions = array<i32: 1>} : vector<128x128xi32>
    %cst_35 = arith.constant 0.000000e+00 : f32
    %46 = vector.broadcast %cst_35 : f32 to vector<128x128xf32>
    %47 = arith.subf %46, %44 : vector<128x128xf32>
    %48 = math.exp %47 : vector<128x128xf32>
    %cst_36 = arith.constant 1.000000e+00 : f32
    %49 = vector.broadcast %cst_36 : f32 to vector<128x128xf32>
    %50 = arith.addf %49, %48 : vector<128x128xf32>
    %cst_37 = arith.constant 1.000000e+00 : f32
    %51 = vector.broadcast %cst_37 : f32 to vector<128x128xf32>
    %52 = arith.divf %51, %50 : vector<128x128xf32>
    %c5_i32 = arith.constant 5 : i32
    %53 = vector.broadcast %c5_i32 : i32 to vector<128x128xi32>
    %54 = arith.cmpi slt, %45, %53 : vector<128x128xi32>
    %55 = arith.select %54, %52, %44 : vector<128x128xi1>, vector<128x128xf32>
    %c0_38 = arith.constant 0 : index
    %c0_39 = arith.constant 0 : index
    %56 = vector.load %arg13[%c0_38, %c0_39] : memref<128x128xf32, #tpu.memory_space<vmem>>, vector<128x128xf32>
    tpu.vector_store %arg13[%c0_38, %c0_39], %55 {strides = array<i32>} : memref<128x128xf32, #tpu.memory_space<vmem>>, vector<128x128xf32>,
    return
  }
}

</mosaic_0001>

<llo_original>
// kernel: centernet_forward.1
$region0: #{centernet_forward.1}
  #allocation0 [shape = 'u32[]', space=smem, size = 0x4, offset = 0x4, fixed_abs, tag = 'smem constant byte address 0x4 - core index']
  #allocation1 [shape = 'u32[144,128]{1,0:T(1,128)}', space=vmem, size = 0x12000, scoped, tag = 'internal scratch']
  %s0 = inlined_call_operand.vmem [shape: bf16[512,4], index: 0, kind: input, shape index: {}]
  %s1 = inlined_call_operand.vmem [shape: bf16[128,512], index: 1, kind: input, shape index: {}]
  %s2 = inlined_call_operand.vmem [shape: bf16[4,16], index: 2, kind: input, shape index: {}]
  %s3 = inlined_call_operand.vmem [shape: f32[1,16], index: 3, kind: input, shape index: {}]
  %s4 = inlined_call_operand.vmem [shape: bf16[16,16], index: 4, kind: input, shape index: {}]
  %s5 = inlined_call_operand.vmem [shape: f32[1,16], index: 5, kind: input, shape index: {}]
  %s6 = inlined_call_operand.vmem [shape: bf16[16,32], index: 6, kind: input, shape index: {}]
  %s7 = inlined_call_operand.vmem [shape: f32[1,32], index: 7, kind: input, shape index: {}]
  %s8 = inlined_call_operand.vmem [shape: bf16[32,32], index: 8, kind: input, shape index: {}]
  %s9 = inlined_call_operand.vmem [shape: f32[1,32], index: 9, kind: input, shape index: {}]
  %s10 = inlined_call_operand.vmem [shape: bf16[32,128], index: 10, kind: input, shape index: {}]
  %s11 = inlined_call_operand.vmem [shape: bf16[32,128], index: 11, kind: input, shape index: {}]
  %s12 = inlined_call_operand.vmem [shape: f32[1,128], index: 12, kind: input, shape index: {}]
  %s13 = inlined_call_operand.vmem [shape: f32[128,128], index: 13, kind: output, shape index: {}]
  %s14 = sld [smem:[#allocation0]]
  $region62: #{centernet_forward.1} parent=0
    _
  %s16 = ssub.s32 1, %s14
  %s17 = scalar_select 0, %s16, %s14
  // Predicated region
  $region2: #{centernet_forward.1} parent=0 // pred_check
    _
  $region3: #{centernet_forward.1} parent=0 // pred_check_branch
    %19 = sbr.rel (0) target = $region5
  $region4: #{centernet_forward.1} parent=0 // pred_region
    _
  $region5: #{centernet_forward.1} parent=0 // pred_fallthru
    _
  // Predicated region
  $region6: #{centernet_forward.1} parent=0 // pred_check
    _
  $region7: #{centernet_forward.1} parent=0 // pred_check_branch
    %21 = sbr.rel (0) target = $region9
  $region8: #{centernet_forward.1} parent=0 // pred_region
    _
  $region9: #{centernet_forward.1} parent=0 // pred_fallthru
    _
  // Predicated region
  $region10: #{centernet_forward.1} parent=0 // pred_check
    _
  $region11: #{centernet_forward.1} parent=0 // pred_check_branch
    %23 = sbr.rel (0) target = $region13
  $region12: #{centernet_forward.1} parent=0 // pred_region
    _
  $region13: #{centernet_forward.1} parent=0 // pred_fallthru
    _
  // Predicated region
  $region14: #{centernet_forward.1} parent=0 // pred_check
    _
  $region15: #{centernet_forward.1} parent=0 // pred_check_branch
    %25 = sbr.rel (0) target = $region17
  $region16: #{centernet_forward.1} parent=0 // pred_region
    _
  $region17: #{centernet_forward.1} parent=0 // pred_fallthru
    _
  // Predicated region
  $region18: #{centernet_forward.1} parent=0 // pred_check
    _
  $region19: #{centernet_forward.1} parent=0 // pred_check_branch
    %27 = sbr.rel (0) target = $region21
  $region20: #{centernet_forward.1} parent=0 // pred_region
    _
  $region21: #{centernet_forward.1} parent=0 // pred_fallthru
    _
  // Predicated region
  $region22: #{centernet_forward.1} parent=0 // pred_check
    _
  $region23: #{centernet_forward.1} parent=0 // pred_check_branch
    %29 = sbr.rel (0) target = $region25
  $region24: #{centernet_forward.1} parent=0 // pred_region
    _
  $region25: #{centernet_forward.1} parent=0 // pred_fallthru
    _
  // Predicated region
  $region26: #{centernet_forward.1} parent=0 // pred_check
    _
  $region27: #{centernet_forward.1} parent=0 // pred_check_branch
    %31 = sbr.rel (0) target = $region29
  $region28: #{centernet_forward.1} parent=0 // pred_region
    _
  $region29: #{centernet_forward.1} parent=0 // pred_fallthru
    _
  // Predicated region
  $region30: #{centernet_forward.1} parent=0 // pred_check
    _
  $region31: #{centernet_forward.1} parent=0 // pred_check_branch
    %33 = sbr.rel (0) target = $region33
  $region32: #{centernet_forward.1} parent=0 // pred_region
    _
  $region33: #{centernet_forward.1} parent=0 // pred_fallthru
    _
  // Predicated region
  $region34: #{centernet_forward.1} parent=0 // pred_check
    _
  $region35: #{centernet_forward.1} parent=0 // pred_check_branch
    %35 = sbr.rel (0) target = $region37
  $region36: #{centernet_forward.1} parent=0 // pred_region
    _
  $region37: #{centernet_forward.1} parent=0 // pred_fallthru
    _
  // Predicated region
  $region38: #{centernet_forward.1} parent=0 // pred_check
    _
  $region39: #{centernet_forward.1} parent=0 // pred_check_branch
    %37 = sbr.rel (0) target = $region41
  $region40: #{centernet_forward.1} parent=0 // pred_region
    _
  $region41: #{centernet_forward.1} parent=0 // pred_fallthru
    _
  // Predicated region
  $region42: #{centernet_forward.1} parent=0 // pred_check
    _
  $region43: #{centernet_forward.1} parent=0 // pred_check_branch
    %39 = sbr.rel (0) target = $region45
  $region44: #{centernet_forward.1} parent=0 // pred_region
    _
  $region45: #{centernet_forward.1} parent=0 // pred_fallthru
    _
  // Predicated region
  $region46: #{centernet_forward.1} parent=0 // pred_check
    _
  $region47: #{centernet_forward.1} parent=0 // pred_check_branch
    %41 = sbr.rel (0) target = $region49
  $region48: #{centernet_forward.1} parent=0 // pred_region
    _
  $region49: #{centernet_forward.1} parent=0 // pred_fallthru
    _
  // Predicated region
  $region50: #{centernet_forward.1} parent=0 // pred_check
    _
  $region51: #{centernet_forward.1} parent=0 // pred_check_branch
    %43 = sbr.rel (0) target = $region53
  $region52: #{centernet_forward.1} parent=0 // pred_region
    _
  $region53: #{centernet_forward.1} parent=0 // pred_fallthru
    _
  %v45 = vld [vmem:[%s0] sm:$0xf]
  %v46 = vld [vmem:[%s0 + $0x4] sm:$0xf]
  %v47 = vld [vmem:[%s0 + $0x8] sm:$0xf]
  %v48 = vld [vmem:[%s0 + $0xc] sm:$0xf]
  %v49 = vld [vmem:[%s0 + $0x10] sm:$0xf]
  %v50 = vld [vmem:[%s0 + $0x14] sm:$0xf]
  %v51 = vld [vmem:[%s0 + $0x18] sm:$0xf]
  %v52 = vld [vmem:[%s0 + $0x1c] sm:$0xf]
  %v53 = vld [vmem:[%s0 + $0x20] sm:$0xf]
  %v54 = vld [vmem:[%s0 + $0x24] sm:$0xf]
  %v55 = vld [vmem:[%s0 + $0x28] sm:$0xf]
  %v56 = vld [vmem:[%s0 + $0x2c] sm:$0xf]
  %v57 = vld [vmem:[%s0 + $0x30] sm:$0xf]
  %v58 = vld [vmem:[%s0 + $0x34] sm:$0xf]
  %v59 = vld [vmem:[%s0 + $0x38] sm:$0xf]
  %v60 = vld [vmem:[%s0 + $0x3c] sm:$0xf]
  %v61 = vld [vmem:[%s0 + $0x40] sm:$0xf]
  %v62 = vld [vmem:[%s0 + $0x44] sm:$0xf]
  %v63 = vld [vmem:[%s0 + $0x48] sm:$0xf]
  %v64 = vld [vmem:[%s0 + $0x4c] sm:$0xf]
  %v65 = vld [vmem:[%s0 + $0x50] sm:$0xf]
  %v66 = vld [vmem:[%s0 + $0x54] sm:$0xf]
  %v67 = vld [vmem:[%s0 + $0x58] sm:$0xf]
  %v68 = vld [vmem:[%s0 + $0x5c] sm:$0xf]
  %v69 = vld [vmem:[%s0 + $0x60] sm:$0xf]
  %v70 = vld [vmem:[%s0 + $0x64] sm:$0xf]
  %v71 = vld [vmem:[%s0 + $0x68] sm:$0xf]
  %v72 = vld [vmem:[%s0 + $0x6c] sm:$0xf]
  %v73 = vld [vmem:[%s0 + $0x70] sm:$0xf]
  %v74 = vld [vmem:[%s0 + $0x74] sm:$0xf]
  %v75 = vld [vmem:[%s0 + $0x78] sm:$0xf]
  %v76 = vld [vmem:[%s0 + $0x7c] sm:$0xf]
  %v77 = vld [vmem:[%s0 + $0x80] sm:$0xf]
  %v78 = vld [vmem:[%s0 + $0x84] sm:$0xf]
  %v79 = vld [vmem:[%s0 + $0x88] sm:$0xf]
  %v80 = vld [vmem:[%s0 + $0x8c] sm:$0xf]
  %v81 = vld [vmem:[%s0 + $0x90] sm:$0xf]
  %v82 = vld [vmem:[%s0 + $0x94] sm:$0xf]
  %v83 = vld [vmem:[%s0 + $0x98] sm:$0xf]
  %v84 = vld [vmem:[%s0 + $0x9c] sm:$0xf]
  %v85 = vld [vmem:[%s0 + $0xa0] sm:$0xf]
  %v86 = vld [vmem:[%s0 + $0xa4] sm:$0xf]
  %v87 = vld [vmem:[%s0 + $0xa8] sm:$0xf]
  %v88 = vld [vmem:[%s0 + $0xac] sm:$0xf]
  %v89 = vld [vmem:[%s0 + $0xb0] sm:$0xf]
  %v90 = vld [vmem:[%s0 + $0xb4] sm:$0xf]
  %v91 = vld [vmem:[%s0 + $0xb8] sm:$0xf]
  %v92 = vld [vmem:[%s0 + $0xbc] sm:$0xf]
  %v93 = vld [vmem:[%s0 + $0xc0] sm:$0xf]
  %v94 = vld [vmem:[%s0 + $0xc4] sm:$0xf]
  %v95 = vld [vmem:[%s0 + $0xc8] sm:$0xf]
  %v96 = vld [vmem:[%s0 + $0xcc] sm:$0xf]
  %v97 = vld [vmem:[%s0 + $0xd0] sm:$0xf]
  %v98 = vld [vmem:[%s0 + $0xd4] sm:$0xf]
  %v99 = vld [vmem:[%s0 + $0xd8] sm:$0xf]
  %v100 = vld [vmem:[%s0 + $0xdc] sm:$0xf]
  %v101 = vld [vmem:[%s0 + $0xe0] sm:$0xf]
  %v102 = vld [vmem:[%s0 + $0xe4] sm:$0xf]
  %v103 = vld [vmem:[%s0 + $0xe8] sm:$0xf]
  %v104 = vld [vmem:[%s0 + $0xec] sm:$0xf]
  %v105 = vld [vmem:[%s0 + $0xf0] sm:$0xf]
  %v106 = vld [vmem:[%s0 + $0xf4] sm:$0xf]
  %v107 = vld [vmem:[%s0 + $0xf8] sm:$0xf]
  %v108 = vld [vmem:[%s0 + $0xfc] sm:$0xf]
  %v109 = vld [vmem:[%s2] sm:$0x3]
  %v110 = vld [vmem:[%s3] sm:$0x1]
  %v112 = vlaneseq
  %v113 = vshrl.u32 %v112, 7
  %v114 = vsub.s32 0, %v113
  %v115 = vrot.slane %v110, %v114
  %v181 = vunpack.c.l.b16 %v45
  %v182 = vunpack.c.l.b16 %v46
  %v183 = vunpack.c.l.b16 %v47
  %v184 = vunpack.c.l.b16 %v48
  %v185 = vunpack.c.l.b16 %v49
  %v186 = vunpack.c.l.b16 %v50
  %v187 = vunpack.c.l.b16 %v51
  %v188 = vunpack.c.l.b16 %v52
  %v189 = vunpack.c.l.b16 %v53
  %v190 = vunpack.c.l.b16 %v54
  %v191 = vunpack.c.l.b16 %v55
  %v192 = vunpack.c.l.b16 %v56
  %v193 = vunpack.c.l.b16 %v57
  %v194 = vunpack.c.l.b16 %v58
  %v195 = vunpack.c.l.b16 %v59
  %v196 = vunpack.c.l.b16 %v60
  %v197 = vunpack.c.l.b16 %v61
  %v198 = vunpack.c.l.b16 %v62
  %v199 = vunpack.c.l.b16 %v63
  %v200 = vunpack.c.l.b16 %v64
  %v201 = vunpack.c.l.b16 %v65
  %v202 = vunpack.c.l.b16 %v66
  %v203 = vunpack.c.l.b16 %v67
  %v204 = vunpack.c.l.b16 %v68
  %v205 = vunpack.c.l.b16 %v69
  %v206 = vunpack.c.l.b16 %v70
  %v207 = vunpack.c.l.b16 %v71
  %v208 = vunpack.c.l.b16 %v72
  %v209 = vunpack.c.l.b16 %v73
  %v210 = vunpack.c.l.b16 %v74
  %v211 = vunpack.c.l.b16 %v75
  %v212 = vunpack.c.l.b16 %v76
  %v213 = vunpack.c.l.b16 %v77
  %v214 = vunpack.c.l.b16 %v78
  %v215 = vunpack.c.l.b16 %v79
  %v216 = vunpack.c.l.b16 %v80
  %v217 = vunpack.c.l.b16 %v81
  %v218 = vunpack.c.l.b16 %v82
  %v219 = vunpack.c.l.b16 %v83
  %v220 = vunpack.c.l.b16 %v84
  %v221 = vunpack.c.l.b16 %v85
  %v222 = vunpack.c.l.b16 %v86
  %v223 = vunpack.c.l.b16 %v87
  %v224 = vunpack.c.l.b16 %v88
  %v225 = vunpack.c.l.b16 %v89
  %v226 = vunpack.c.l.b16 %v90
  %v227 = vunpack.c.l.b16 %v91
  %v228 = vunpack.c.l.b16 %v92
  %v229 = vunpack.c.l.b16 %v93
  %v230 = vunpack.c.l.b16 %v94
  %v231 = vunpack.c.l.b16 %v95
  %v232 = vunpack.c.l.b16 %v96
  %v233 = vunpack.c.l.b16 %v97
  %v234 = vunpack.c.l.b16 %v98
  %v235 = vunpack.c.l.b16 %v99
  %v236 = vunpack.c.l.b16 %v100
  %v237 = vunpack.c.l.b16 %v101
  %v238 = vunpack.c.l.b16 %v102
  %v239 = vunpack.c.l.b16 %v103
  %v240 = vunpack.c.l.b16 %v104
  %v241 = vunpack.c.l.b16 %v105
  %v242 = vunpack.c.l.b16 %v106
  %v243 = vunpack.c.l.b16 %v107
  %v244 = vunpack.c.l.b16 %v108
  %v245 = vpack.c.b16 %v182, %v181
  %v246 = vpack.c.b16 %v184, %v183
  %v247 = vpack.c.b16 %v186, %v185
  %v248 = vpack.c.b16 %v188, %v187
  %v249 = vpack.c.b16 %v190, %v189
  %v250 = vpack.c.b16 %v192, %v191
  %v251 = vpack.c.b16 %v194, %v193
  %v252 = vpack.c.b16 %v196, %v195
  %v253 = vpack.c.b16 %v198, %v197
  %v254 = vpack.c.b16 %v200, %v199
  %v255 = vpack.c.b16 %v202, %v201
  %v256 = vpack.c.b16 %v204, %v203
  %v257 = vpack.c.b16 %v206, %v205
  %v258 = vpack.c.b16 %v208, %v207
  %v259 = vpack.c.b16 %v210, %v209
  %v260 = vpack.c.b16 %v212, %v211
  %v261 = vpack.c.b16 %v214, %v213
  %v262 = vpack.c.b16 %v216, %v215
  %v263 = vpack.c.b16 %v218, %v217
  %v264 = vpack.c.b16 %v220, %v219
  %v265 = vpack.c.b16 %v222, %v221
  %v266 = vpack.c.b16 %v224, %v223
  %v267 = vpack.c.b16 %v226, %v225
  %v268 = vpack.c.b16 %v228, %v227
  %v269 = vpack.c.b16 %v230, %v229
  %v270 = vpack.c.b16 %v232, %v231
  %v271 = vpack.c.b16 %v234, %v233
  %v272 = vpack.c.b16 %v236, %v235
  %v273 = vpack.c.b16 %v238, %v237
  %v274 = vpack.c.b16 %v240, %v239
  %v275 = vpack.c.b16 %v242, %v241
  %v276 = vpack.c.b16 %v244, %v243
  %vm277 = vcmask 31744
  %v279 = vsel %vm277, %v245, 0
  %v282 = vsel %vm277, %v246, 0
  %v285 = vsel %vm277, %v247, 0
  %v288 = vsel %vm277, %v248, 0
  %v291 = vsel %vm277, %v249, 0
  %v294 = vsel %vm277, %v250, 0
  %v297 = vsel %vm277, %v251, 0
  %v300 = vsel %vm277, %v252, 0
  %v303 = vsel %vm277, %v253, 0
  %v306 = vsel %vm277, %v254, 0
  %v309 = vsel %vm277, %v255, 0
  %v312 = vsel %vm277, %v256, 0
  %v315 = vsel %vm277, %v257, 0
  %v318 = vsel %vm277, %v258, 0
  %v321 = vsel %vm277, %v259, 0
  %v324 = vsel %vm277, %v260, 0
  %v327 = vsel %vm277, %v261, 0
  %v330 = vsel %vm277, %v262, 0
  %v333 = vsel %vm277, %v263, 0
  %v336 = vsel %vm277, %v264, 0
  %v339 = vsel %vm277, %v265, 0
  %v342 = vsel %vm277, %v266, 0
  %v345 = vsel %vm277, %v267, 0
  %v348 = vsel %vm277, %v268, 0
  %v351 = vsel %vm277, %v269, 0
  %v354 = vsel %vm277, %v270, 0
  %v357 = vsel %vm277, %v271, 0
  %v360 = vsel %vm277, %v272, 0
  %v363 = vsel %vm277, %v273, 0
  %v366 = vsel %vm277, %v274, 0
  %v369 = vsel %vm277, %v275, 0
  %v372 = vsel %vm277, %v276, 0
  %vm374 = vcmask 1041408
  %v376 = vsel %vm374, %v109, 0
  %378 = vmatprep.subr.bf16.mxu0 0
  %379 = vmatpush1.bf16.msra.mxu0 0
  %380 = vmatprep.subr.bf16.mxu0 0
  %381 = vmatpush1.bf16.msra.mxu0 0
  %382 = vmatprep.subr.bf16.mxu0 0
  %383 = vmatpush1.bf16.msra.mxu0 0
  %384 = vmatprep.subr.bf16.mxu0 0
  %385 = vmatpush1.bf16.msra.mxu0 0
  %386 = vmatprep.subr.bf16.mxu0 0
  %387 = vmatpush1.bf16.msra.mxu0 0
  %388 = vmatprep.subr.bf16.mxu0 0
  %389 = vmatpush1.bf16.msra.mxu0 0
  %390 = vmatprep.subr.bf16.mxu0 0
  %391 = vmatpush1.bf16.msra.mxu0 0
  %392 = vmatprep.subr.bf16.mxu0 0
  %393 = vmatpush1.bf16.msra.mxu0 %v376
  %394 = vmatprep.subr.bf16.mxu0 0
  %395 = vmatpush2.bf16.msra.mxu0 0
  %396 = vmatprep.subr.bf16.mxu0 0
  %397 = vmatpush2.bf16.msra.mxu0 0
  %398 = vmatprep.subr.bf16.mxu0 0
  %399 = vmatpush2.bf16.msra.mxu0 0
  %400 = vmatprep.subr.bf16.mxu0 0
  %401 = vmatpush2.bf16.msra.mxu0 0
  %402 = vmatprep.subr.bf16.mxu0 0
  %403 = vmatpush2.bf16.msra.mxu0 0
  %404 = vmatprep.subr.bf16.mxu0 0
  %405 = vmatpush2.bf16.msra.mxu0 0
  %406 = vmatprep.subr.bf16.mxu0 0
  %407 = vmatpush2.bf16.msra.mxu0 0
  %408 = vmatprep.subr.bf16.mxu0 0
  %409 = vmatpush2.bf16.msra.mxu0 0
  %410 = vmatprep.mubr.bf16.mxu0 0
  %411 = vmatmul.mubr.bf16.gmra.mxu0 %v279
  %v412 = vpop.f32.mrf.mxu0
  %v413 = vadd.f32 %v115, %v412
  %v414 = vpop.f32.mrf.mxu0
  %v415 = vpop.f32.mrf.mxu0
  %v416 = vadd.f32 %v115, %v415
  %v417 = vpop.f32.mrf.mxu0
  %418 = vmatprep.mubr.bf16.mxu0 0
  %419 = vmatmul.mubr.bf16.gmra.mxu0 %v282
  %v420 = vpop.f32.mrf.mxu0
  %v421 = vadd.f32 %v115, %v420
  %v422 = vpop.f32.mrf.mxu0
  %v423 = vpop.f32.mrf.mxu0
  %v424 = vadd.f32 %v115, %v423
  %v425 = vpop.f32.mrf.mxu0
  %426 = vmatprep.mubr.bf16.mxu0 0
  %427 = vmatmul.mubr.bf16.gmra.mxu0 %v285
  %v428 = vpop.f32.mrf.mxu0
  %v429 = vadd.f32 %v115, %v428
  %v430 = vpop.f32.mrf.mxu0
  %v431 = vpop.f32.mrf.mxu0
  %v432 = vadd.f32 %v115, %v431
  %v433 = vpop.f32.mrf.mxu0
  %434 = vmatprep.mubr.bf16.mxu0 0
  %435 = vmatmul.mubr.bf16.gmra.mxu0 %v288
  %v436 = vpop.f32.mrf.mxu0
  %v437 = vadd.f32 %v115, %v436
  %v438 = vpop.f32.mrf.mxu0
  %v439 = vpop.f32.mrf.mxu0
  %v440 = vadd.f32 %v115, %v439
  %v441 = vpop.f32.mrf.mxu0
  %442 = vmatprep.mubr.bf16.mxu0 0
  %443 = vmatmul.mubr.bf16.gmra.mxu0 %v291
  %v444 = vpop.f32.mrf.mxu0
  %v445 = vadd.f32 %v115, %v444
  %v446 = vpop.f32.mrf.mxu0
  %v447 = vpop.f32.mrf.mxu0
  %v448 = vadd.f32 %v115, %v447
  %v449 = vpop.f32.mrf.mxu0
  %450 = vmatprep.mubr.bf16.mxu0 0
  %451 = vmatmul.mubr.bf16.gmra.mxu0 %v294
  %v452 = vpop.f32.mrf.mxu0
  %v453 = vadd.f32 %v115, %v452
  %v454 = vpop.f32.mrf.mxu0
  %v455 = vpop.f32.mrf.mxu0
  %v456 = vadd.f32 %v115, %v455
  %v457 = vpop.f32.mrf.mxu0
  %458 = vmatprep.mubr.bf16.mxu0 0
  %459 = vmatmul.mubr.bf16.gmra.mxu0 %v297
  %v460 = vpop.f32.mrf.mxu0
  %v461 = vadd.f32 %v115, %v460
  %v462 = vpop.f32.mrf.mxu0
  %v463 = vpop.f32.mrf.mxu0
  %v464 = vadd.f32 %v115, %v463
  %v465 = vpop.f32.mrf.mxu0
  %466 = vmatprep.mubr.bf16.mxu0 0
  %467 = vmatmul.mubr.bf16.gmra.mxu0 %v300
  %v468 = vpop.f32.mrf.mxu0
  %v469 = vadd.f32 %v115, %v468
  %v470 = vpop.f32.mrf.mxu0
  %v471 = vpop.f32.mrf.mxu0
  %v472 = vadd.f32 %v115, %v471
  %v473 = vpop.f32.mrf.mxu0
  %474 = vmatprep.mubr.bf16.mxu0 0
  %475 = vmatmul.mubr.bf16.gmra.mxu0 %v303
  %v476 = vpop.f32.mrf.mxu0
  %v477 = vadd.f32 %v115, %v476
  %v478 = vpop.f32.mrf.mxu0
  %v479 = vpop.f32.mrf.mxu0
  %v480 = vadd.f32 %v115, %v479
  %v481 = vpop.f32.mrf.mxu0
  %482 = vmatprep.mubr.bf16.mxu0 0
  %483 = vmatmul.mubr.bf16.gmra.mxu0 %v306
  %v484 = vpop.f32.mrf.mxu0
  %v485 = vadd.f32 %v115, %v484
  %v486 = vpop.f32.mrf.mxu0
  %v487 = vpop.f32.mrf.mxu0
  %v488 = vadd.f32 %v115, %v487
  %v489 = vpop.f32.mrf.mxu0
  %490 = vmatprep.mubr.bf16.mxu0 0
  %491 = vmatmul.mubr.bf16.gmra.mxu0 %v309
  %v492 = vpop.f32.mrf.mxu0
  %v493 = vadd.f32 %v115, %v492
  %v494 = vpop.f32.mrf.mxu0
  %v495 = vpop.f32.mrf.mxu0
  %v496 = vadd.f32 %v115, %v495
  %v497 = vpop.f32.mrf.mxu0
  %498 = vmatprep.mubr.bf16.mxu0 0
  %499 = vmatmul.mubr.bf16.gmra.mxu0 %v312
  %v500 = vpop.f32.mrf.mxu0
  %v501 = vadd.f32 %v115, %v500
  %v502 = vpop.f32.mrf.mxu0
  %v503 = vpop.f32.mrf.mxu0
  %v504 = vadd.f32 %v115, %v503
  %v505 = vpop.f32.mrf.mxu0
  %506 = vmatprep.mubr.bf16.mxu0 0
  %507 = vmatmul.mubr.bf16.gmra.mxu0 %v315
  %v508 = vpop.f32.mrf.mxu0
  %v509 = vadd.f32 %v115, %v508
  %v510 = vpop.f32.mrf.mxu0
  %v511 = vpop.f32.mrf.mxu0
  %v512 = vadd.f32 %v115, %v511
  %v513 = vpop.f32.mrf.mxu0
  %514 = vmatprep.mubr.bf16.mxu0 0
  %515 = vmatmul.mubr.bf16.gmra.mxu0 %v318
  %v516 = vpop.f32.mrf.mxu0
  %v517 = vadd.f32 %v115, %v516
  %v518 = vpop.f32.mrf.mxu0
  %v519 = vpop.f32.mrf.mxu0
  %v520 = vadd.f32 %v115, %v519
  %v521 = vpop.f32.mrf.mxu0
  %522 = vmatprep.mubr.bf16.mxu0 0
  %523 = vmatmul.mubr.bf16.gmra.mxu0 %v321
  %v524 = vpop.f32.mrf.mxu0
  %v525 = vadd.f32 %v115, %v524
  %v526 = vpop.f32.mrf.mxu0
  %v527 = vpop.f32.mrf.mxu0
  %v528 = vadd.f32 %v115, %v527
  %v529 = vpop.f32.mrf.mxu0
  %530 = vmatprep.mubr.bf16.mxu0 0
  %531 = vmatmul.mubr.bf16.gmra.mxu0 %v324
  %v532 = vpop.f32.mrf.mxu0
  %v533 = vadd.f32 %v115, %v532
  %v534 = vpop.f32.mrf.mxu0
  %v535 = vpop.f32.mrf.mxu0
  %v536 = vadd.f32 %v115, %v535
  %v537 = vpop.f32.mrf.mxu0
  %538 = vmatprep.mubr.bf16.mxu0 0
  %539 = vmatmul.mubr.bf16.gmra.mxu0 %v327
  %v540 = vpop.f32.mrf.mxu0
  %v541 = vadd.f32 %v115, %v540
  %v542 = vpop.f32.mrf.mxu0
  %v543 = vpop.f32.mrf.mxu0
  %v544 = vadd.f32 %v115, %v543
  %v545 = vpop.f32.mrf.mxu0
  %546 = vmatprep.mubr.bf16.mxu0 0
  %547 = vmatmul.mubr.bf16.gmra.mxu0 %v330
  %v548 = vpop.f32.mrf.mxu0
  %v549 = vadd.f32 %v115, %v548
  %v550 = vpop.f32.mrf.mxu0
  %v551 = vpop.f32.mrf.mxu0
  %v552 = vadd.f32 %v115, %v551
  %v553 = vpop.f32.mrf.mxu0
  %554 = vmatprep.mubr.bf16.mxu0 0
  %555 = vmatmul.mubr.bf16.gmra.mxu0 %v333
  %v556 = vpop.f32.mrf.mxu0
  %v557 = vadd.f32 %v115, %v556
  %v558 = vpop.f32.mrf.mxu0
  %v559 = vpop.f32.mrf.mxu0
  %v560 = vadd.f32 %v115, %v559
  %v561 = vpop.f32.mrf.mxu0
  %562 = vmatprep.mubr.bf16.mxu0 0
  %563 = vmatmul.mubr.bf16.gmra.mxu0 %v336
  %v564 = vpop.f32.mrf.mxu0
  %v565 = vadd.f32 %v115, %v564
  %v566 = vpop.f32.mrf.mxu0
  %v567 = vpop.f32.mrf.mxu0
  %v568 = vadd.f32 %v115, %v567
  %v569 = vpop.f32.mrf.mxu0
  %570 = vmatprep.mubr.bf16.mxu0 0
  %571 = vmatmul.mubr.bf16.gmra.mxu0 %v339
  %v572 = vpop.f32.mrf.mxu0
  %v573 = vadd.f32 %v115, %v572
  %v574 = vpop.f32.mrf.mxu0
  %v575 = vpop.f32.mrf.mxu0
  %v576 = vadd.f32 %v115, %v575
  %v577 = vpop.f32.mrf.mxu0
  %578 = vmatprep.mubr.bf16.mxu0 0
  %579 = vmatmul.mubr.bf16.gmra.mxu0 %v342
  %v580 = vpop.f32.mrf.mxu0
  %v581 = vadd.f32 %v115, %v580
  %v582 = vpop.f32.mrf.mxu0
  %v583 = vpop.f32.mrf.mxu0
  %v584 = vadd.f32 %v115, %v583
  %v585 = vpop.f32.mrf.mxu0
  %586 = vmatprep.mubr.bf16.mxu0 0
  %587 = vmatmul.mubr.bf16.gmra.mxu0 %v345
  %v588 = vpop.f32.mrf.mxu0
  %v589 = vadd.f32 %v115, %v588
  %v590 = vpop.f32.mrf.mxu0
  %v591 = vpop.f32.mrf.mxu0
  %v592 = vadd.f32 %v115, %v591
  %v593 = vpop.f32.mrf.mxu0
  %594 = vmatprep.mubr.bf16.mxu0 0
  %595 = vmatmul.mubr.bf16.gmra.mxu0 %v348
  %v596 = vpop.f32.mrf.mxu0
  %v597 = vadd.f32 %v115, %v596
  %v598 = vpop.f32.mrf.mxu0
  %v599 = vpop.f32.mrf.mxu0
  %v600 = vadd.f32 %v115, %v599
  %v601 = vpop.f32.mrf.mxu0
  %602 = vmatprep.mubr.bf16.mxu0 0
  %603 = vmatmul.mubr.bf16.gmra.mxu0 %v351
  %v604 = vpop.f32.mrf.mxu0
  %v605 = vadd.f32 %v115, %v604
  %v606 = vpop.f32.mrf.mxu0
  %v607 = vpop.f32.mrf.mxu0
  %v608 = vadd.f32 %v115, %v607
  %v609 = vpop.f32.mrf.mxu0
  %610 = vmatprep.mubr.bf16.mxu0 0
  %611 = vmatmul.mubr.bf16.gmra.mxu0 %v354
  %v612 = vpop.f32.mrf.mxu0
  %v613 = vadd.f32 %v115, %v612
  %v614 = vpop.f32.mrf.mxu0
  %v615 = vpop.f32.mrf.mxu0
  %v616 = vadd.f32 %v115, %v615
  %v617 = vpop.f32.mrf.mxu0
  %618 = vmatprep.mubr.bf16.mxu0 0
  %619 = vmatmul.mubr.bf16.gmra.mxu0 %v357
  %v620 = vpop.f32.mrf.mxu0
  %v621 = vadd.f32 %v115, %v620
  %v622 = vpop.f32.mrf.mxu0
  %v623 = vpop.f32.mrf.mxu0
  %v624 = vadd.f32 %v115, %v623
  %v625 = vpop.f32.mrf.mxu0
  %626 = vmatprep.mubr.bf16.mxu0 0
  %627 = vmatmul.mubr.bf16.gmra.mxu0 %v360
  %v628 = vpop.f32.mrf.mxu0
  %v629 = vadd.f32 %v115, %v628
  %v630 = vpop.f32.mrf.mxu0
  %v631 = vpop.f32.mrf.mxu0
  %v632 = vadd.f32 %v115, %v631
  %v633 = vpop.f32.mrf.mxu0
  %634 = vmatprep.mubr.bf16.mxu0 0
  %635 = vmatmul.mubr.bf16.gmra.mxu0 %v363
  %v636 = vpop.f32.mrf.mxu0
  %v637 = vadd.f32 %v115, %v636
  %v638 = vpop.f32.mrf.mxu0
  %v639 = vpop.f32.mrf.mxu0
  %v640 = vadd.f32 %v115, %v639
  %v641 = vpop.f32.mrf.mxu0
  %642 = vmatprep.mubr.bf16.mxu0 0
  %643 = vmatmul.mubr.bf16.gmra.mxu0 %v366
  %v644 = vpop.f32.mrf.mxu0
  %v645 = vadd.f32 %v115, %v644
  %v646 = vpop.f32.mrf.mxu0
  %v647 = vpop.f32.mrf.mxu0
  %v648 = vadd.f32 %v115, %v647
  %v649 = vpop.f32.mrf.mxu0
  %650 = vmatprep.mubr.bf16.mxu0 0
  %651 = vmatmul.mubr.bf16.gmra.mxu0 %v369
  %v652 = vpop.f32.mrf.mxu0
  %v653 = vadd.f32 %v115, %v652
  %v654 = vpop.f32.mrf.mxu0
  %v655 = vpop.f32.mrf.mxu0
  %v656 = vadd.f32 %v115, %v655
  %v657 = vpop.f32.mrf.mxu0
  %658 = vmatprep.mubr.bf16.mxu0 0
  %659 = vmatmul.mubr.bf16.gmra.mxu0 %v372
  %v660 = vpop.f32.mrf.mxu0
  %v661 = vadd.f32 %v115, %v660
  %v662 = vpop.f32.mrf.mxu0
  %v663 = vpop.f32.mrf.mxu0
  %v664 = vadd.f32 %v115, %v663
  %v665 = vpop.f32.mrf.mxu0
  %666 = vdwg.mxu0
  %v667 = vmax.f32 %v413, 0.0
  %v668 = vmax.f32 %v416, 0.0
  %v669 = vmax.f32 %v421, 0.0
  %v670 = vmax.f32 %v424, 0.0
  %v671 = vmax.f32 %v429, 0.0
  %v672 = vmax.f32 %v432, 0.0
  %v673 = vmax.f32 %v437, 0.0
  %v674 = vmax.f32 %v440, 0.0
  %v675 = vmax.f32 %v445, 0.0
  %v676 = vmax.f32 %v448, 0.0
  %v677 = vmax.f32 %v453, 0.0
  %v678 = vmax.f32 %v456, 0.0
  %v679 = vmax.f32 %v461, 0.0
  %v680 = vmax.f32 %v464, 0.0
  %v681 = vmax.f32 %v469, 0.0
  %v682 = vmax.f32 %v472, 0.0
  %v683 = vmax.f32 %v477, 0.0
  %v684 = vmax.f32 %v480, 0.0
  %v685 = vmax.f32 %v485, 0.0
  %v686 = vmax.f32 %v488, 0.0
  %v687 = vmax.f32 %v493, 0.0
  %v688 = vmax.f32 %v496, 0.0
  %v689 = vmax.f32 %v501, 0.0
  %v690 = vmax.f32 %v504, 0.0
  %v691 = vmax.f32 %v509, 0.0
  %v692 = vmax.f32 %v512, 0.0
  %v693 = vmax.f32 %v517, 0.0
  %v694 = vmax.f32 %v520, 0.0
  %v695 = vmax.f32 %v525, 0.0
  %v696 = vmax.f32 %v528, 0.0
  %v697 = vmax.f32 %v533, 0.0
  %v698 = vmax.f32 %v536, 0.0
  %v699 = vmax.f32 %v541, 0.0
  %v700 = vmax.f32 %v544, 0.0
  %v701 = vmax.f32 %v549, 0.0
  %v702 = vmax.f32 %v552, 0.0
  %v703 = vmax.f32 %v557, 0.0
  %v704 = vmax.f32 %v560, 0.0
  %v705 = vmax.f32 %v565, 0.0
  %v706 = vmax.f32 %v568, 0.0
  %v707 = vmax.f32 %v573, 0.0
  %v708 = vmax.f32 %v576, 0.0
  %v709 = vmax.f32 %v581, 0.0
  %v710 = vmax.f32 %v584, 0.0
  %v711 = vmax.f32 %v589, 0.0
  %v712 = vmax.f32 %v592, 0.0
  %v713 = vmax.f32 %v597, 0.0
  %v714 = vmax.f32 %v600, 0.0
  %v715 = vmax.f32 %v605, 0.0
  %v716 = vmax.f32 %v608, 0.0
  %v717 = vmax.f32 %v613, 0.0
  %v718 = vmax.f32 %v616, 0.0
  %v719 = vmax.f32 %v621, 0.0
  %v720 = vmax.f32 %v624, 0.0
  %v721 = vmax.f32 %v629, 0.0
  %v722 = vmax.f32 %v632, 0.0
  %v723 = vmax.f32 %v637, 0.0
  %v724 = vmax.f32 %v640, 0.0
  %v725 = vmax.f32 %v645, 0.0
  %v726 = vmax.f32 %v648, 0.0
  %v727 = vmax.f32 %v653, 0.0
  %v728 = vmax.f32 %v656, 0.0
  %v729 = vmax.f32 %v661, 0.0
  %v730 = vmax.f32 %v664, 0.0
  %v731 = vld [vmem:[%s1] sm:$0xff]
  %v732 = vld [vmem:[%s1 + $0x8] sm:$0xff]
  %v733 = vld [vmem:[%s1 + $0x10] sm:$0xff]
  %v734 = vld [vmem:[%s1 + $0x18] sm:$0xff]
  %v735 = vld [vmem:[%s1 + $0x20] sm:$0xff]
  %v736 = vld [vmem:[%s1 + $0x28] sm:$0xff]
  %v737 = vld [vmem:[%s1 + $0x30] sm:$0xff]
  %v738 = vld [vmem:[%s1 + $0x38] sm:$0xff]
  %v739 = vld [vmem:[%s1 + $0x40] sm:$0xff]
  %v740 = vld [vmem:[%s1 + $0x48] sm:$0xff]
  %v741 = vld [vmem:[%s1 + $0x50] sm:$0xff]
  %v742 = vld [vmem:[%s1 + $0x58] sm:$0xff]
  %v743 = vld [vmem:[%s1 + $0x60] sm:$0xff]
  %v744 = vld [vmem:[%s1 + $0x68] sm:$0xff]
  %v745 = vld [vmem:[%s1 + $0x70] sm:$0xff]
  %v746 = vld [vmem:[%s1 + $0x78] sm:$0xff]
  %v747 = vld [vmem:[%s1 + $0x80] sm:$0xff]
  %v748 = vld [vmem:[%s1 + $0x88] sm:$0xff]
  %v749 = vld [vmem:[%s1 + $0x90] sm:$0xff]
  %v750 = vld [vmem:[%s1 + $0x98] sm:$0xff]
  %v751 = vld [vmem:[%s1 + $0xa0] sm:$0xff]
  %v752 = vld [vmem:[%s1 + $0xa8] sm:$0xff]
  %v753 = vld [vmem:[%s1 + $0xb0] sm:$0xff]
  %v754 = vld [vmem:[%s1 + $0xb8] sm:$0xff]
  %v755 = vld [vmem:[%s1 + $0xc0] sm:$0xff]
  %v756 = vld [vmem:[%s1 + $0xc8] sm:$0xff]
  %v757 = vld [vmem:[%s1 + $0xd0] sm:$0xff]
  %v758 = vld [vmem:[%s1 + $0xd8] sm:$0xff]
  %v759 = vld [vmem:[%s1 + $0xe0] sm:$0xff]
  %v760 = vld [vmem:[%s1 + $0xe8] sm:$0xff]
  %v761 = vld [vmem:[%s1 + $0xf0] sm:$0xff]
  %v762 = vld [vmem:[%s1 + $0xf8] sm:$0xff]
  %v763 = vpack.c.bf16 %v668, %v667
  %v764 = vpack.c.bf16 %v670, %v669
  %v765 = vpack.c.bf16 %v672, %v671
  %v766 = vpack.c.bf16 %v674, %v673
  %v767 = vpack.c.bf16 %v676, %v675
  %v768 = vpack.c.bf16 %v678, %v677
  %v769 = vpack.c.bf16 %v680, %v679
  %v770 = vpack.c.bf16 %v682, %v681
  %v771 = vpack.c.bf16 %v684, %v683
  %v772 = vpack.c.bf16 %v686, %v685
  %v773 = vpack.c.bf16 %v688, %v687
  %v774 = vpack.c.bf16 %v690, %v689
  %v775 = vpack.c.bf16 %v692, %v691
  %v776 = vpack.c.bf16 %v694, %v693
  %v777 = vpack.c.bf16 %v696, %v695
  %v778 = vpack.c.bf16 %v698, %v697
  %v779 = vpack.c.bf16 %v700, %v699
  %v780 = vpack.c.bf16 %v702, %v701
  %v781 = vpack.c.bf16 %v704, %v703
  %v782 = vpack.c.bf16 %v706, %v705
  %v783 = vpack.c.bf16 %v708, %v707
  %v784 = vpack.c.bf16 %v710, %v709
  %v785 = vpack.c.bf16 %v712, %v711
  %v786 = vpack.c.bf16 %v714, %v713
  %v787 = vpack.c.bf16 %v716, %v715
  %v788 = vpack.c.bf16 %v718, %v717
  %v789 = vpack.c.bf16 %v720, %v719
  %v790 = vpack.c.bf16 %v722, %v721
  %v791 = vpack.c.bf16 %v724, %v723
  %v792 = vpack.c.bf16 %v726, %v725
  %v793 = vpack.c.bf16 %v728, %v727
  %v794 = vpack.c.bf16 %v730, %v729
  %v827 = vunpack.c.l.b16 %v731
  %v828 = vunpack.c.h.b16 %v731
  %v829 = vunpack.c.l.b16 %v732
  %v830 = vunpack.c.h.b16 %v732
  %v831 = vunpack.c.l.b16 %v733
  %v832 = vunpack.c.h.b16 %v733
  %v833 = vunpack.c.l.b16 %v734
  %v834 = vunpack.c.h.b16 %v734
  %v835 = vunpack.c.l.b16 %v735
  %v836 = vunpack.c.h.b16 %v735
  %v837 = vunpack.c.l.b16 %v736
  %v838 = vunpack.c.h.b16 %v736
  %v839 = vunpack.c.l.b16 %v737
  %v840 = vunpack.c.h.b16 %v737
  %v841 = vunpack.c.l.b16 %v738
  %v842 = vunpack.c.h.b16 %v738
  %v843 = vunpack.c.l.b16 %v739
  %v844 = vunpack.c.h.b16 %v739
  %v845 = vunpack.c.l.b16 %v740
  %v846 = vunpack.c.h.b16 %v740
  %v847 = vunpack.c.l.b16 %v741
  %v848 = vunpack.c.h.b16 %v741
  %v849 = vunpack.c.l.b16 %v742
  %v850 = vunpack.c.h.b16 %v742
  %v851 = vunpack.c.l.b16 %v743
  %v852 = vunpack.c.h.b16 %v743
  %v853 = vunpack.c.l.b16 %v744
  %v854 = vunpack.c.h.b16 %v744
  %v855 = vunpack.c.l.b16 %v745
  %v856 = vunpack.c.h.b16 %v745
  %v857 = vunpack.c.l.b16 %v746
  %v858 = vunpack.c.h.b16 %v746
  %v859 = vunpack.c.l.b16 %v747
  %v860 = vunpack.c.h.b16 %v747
  %v861 = vunpack.c.l.b16 %v748
  %v862 = vunpack.c.h.b16 %v748
  %v863 = vunpack.c.l.b16 %v749
  %v864 = vunpack.c.h.b16 %v749
  %v865 = vunpack.c.l.b16 %v750
  %v866 = vunpack.c.h.b16 %v750
  %v867 = vunpack.c.l.b16 %v751
  %v868 = vunpack.c.h.b16 %v751
  %v869 = vunpack.c.l.b16 %v752
  %v870 = vunpack.c.h.b16 %v752
  %v871 = vunpack.c.l.b16 %v753
  %v872 = vunpack.c.h.b16 %v753
  %v873 = vunpack.c.l.b16 %v754
  %v874 = vunpack.c.h.b16 %v754
  %v875 = vunpack.c.l.b16 %v755
  %v876 = vunpack.c.h.b16 %v755
  %v877 = vunpack.c.l.b16 %v756
  %v878 = vunpack.c.h.b16 %v756
  %v879 = vunpack.c.l.b16 %v757
  %v880 = vunpack.c.h.b16 %v757
  %v881 = vunpack.c.l.b16 %v758
  %v882 = vunpack.c.h.b16 %v758
  %v883 = vunpack.c.l.b16 %v759
  %v884 = vunpack.c.h.b16 %v759
  %v885 = vunpack.c.l.b16 %v760
  %v886 = vunpack.c.h.b16 %v760
  %v887 = vunpack.c.l.b16 %v761
  %v888 = vunpack.c.h.b16 %v761
  %v889 = vunpack.c.l.b16 %v762
  %v890 = vunpack.c.h.b16 %v762
  %v891 = vpack.c.b16 %v831, %v827
  %v892 = vpack.c.b16 %v832, %v828
  %v893 = vpack.c.b16 %v833, %v829
  %v894 = vpack.c.b16 %v834, %v830
  %v895 = vpack.c.b16 %v839, %v835
  %v896 = vpack.c.b16 %v840, %v836
  %v897 = vpack.c.b16 %v841, %v837
  %v898 = vpack.c.b16 %v842, %v838
  %v899 = vpack.c.b16 %v847, %v843
  %v900 = vpack.c.b16 %v848, %v844
  %v901 = vpack.c.b16 %v849, %v845
  %v902 = vpack.c.b16 %v850, %v846
  %v903 = vpack.c.b16 %v855, %v851
  %v904 = vpack.c.b16 %v856, %v852
  %v905 = vpack.c.b16 %v857, %v853
  %v906 = vpack.c.b16 %v858, %v854
  %v907 = vpack.c.b16 %v863, %v859
  %v908 = vpack.c.b16 %v864, %v860
  %v909 = vpack.c.b16 %v865, %v861
  %v910 = vpack.c.b16 %v866, %v862
  %v911 = vpack.c.b16 %v871, %v867
  %v912 = vpack.c.b16 %v872, %v868
  %v913 = vpack.c.b16 %v873, %v869
  %v914 = vpack.c.b16 %v874, %v870
  %v915 = vpack.c.b16 %v879, %v875
  %v916 = vpack.c.b16 %v880, %v876
  %v917 = vpack.c.b16 %v881, %v877
  %v918 = vpack.c.b16 %v882, %v878
  %v919 = vpack.c.b16 %v887, %v883
  %v920 = vpack.c.b16 %v888, %v884
  %v921 = vpack.c.b16 %v889, %v885
  %v922 = vpack.c.b16 %v890, %v886
  %955 = vmatprep.subr.bf16.mxu0 0
  %956 = vmatpush1.bf16.msra.mxu0 %v770
  %957 = vmatprep.subr.bf16.mxu0 0
  %958 = vmatpush1.bf16.msra.mxu0 %v769
  %959 = vmatprep.subr.bf16.mxu0 0
  %960 = vmatpush1.bf16.msra.mxu0 %v768
  %961 = vmatprep.subr.bf16.mxu0 0
  %962 = vmatpush1.bf16.msra.mxu0 %v767
  %963 = vmatprep.subr.bf16.mxu0 0
  %964 = vmatpush1.bf16.msra.mxu0 %v766
  %965 = vmatprep.subr.bf16.mxu0 0
  %966 = vmatpush1.bf16.msra.mxu0 %v765
  %967 = vmatprep.subr.bf16.mxu0 0
  %968 = vmatpush1.bf16.msra.mxu0 %v764
  %969 = vmatprep.subr.bf16.mxu0 0
  %970 = vmatpush1.bf16.msra.mxu0 %v763
  %971 = vmatprep.subr.bf16.mxu0 0
  %972 = vmatpush2.bf16.msra.mxu0 %v778
  %973 = vmatprep.subr.bf16.mxu0 0
  %974 = vmatpush2.bf16.msra.mxu0 %v777
  %975 = vmatprep.subr.bf16.mxu0 0
  %976 = vmatpush2.bf16.msra.mxu0 %v776
  %977 = vmatprep.subr.bf16.mxu0 0
  %978 = vmatpush2.bf16.msra.mxu0 %v775
  %979 = vmatprep.subr.bf16.mxu0 0
  %980 = vmatpush2.bf16.msra.mxu0 %v774
  %981 = vmatprep.subr.bf16.mxu0 0
  %982 = vmatpush2.bf16.msra.mxu0 %v773
  %983 = vmatprep.subr.bf16.mxu0 0
  %984 = vmatpush2.bf16.msra.mxu0 %v772
  %985 = vmatprep.subr.bf16.mxu0 0
  %986 = vmatpush2.bf16.msra.mxu0 %v771
  %987 = vmatprep.mubr.bf16.mxu0 %v892
  %988 = vmatmul.mubr.bf16.gmra.mxu0 %v891
  %v989 = vpop.f32.mrf.mxu0
  %v990 = vadd.f32 0.0, %v989
  %v991 = vpop.f32.mrf.mxu0
  %v992 = vpop.f32.mrf.mxu0
  %v993 = vadd.f32 0.0, %v992
  %v994 = vpop.f32.mrf.mxu0
  %995 = vmatprep.mubr.bf16.mxu0 %v896
  %996 = vmatmul.mubr.bf16.gmra.mxu0 %v895
  %v997 = vpop.f32.mrf.mxu0
  %v998 = vadd.f32 0.0, %v997
  %v999 = vpop.f32.mrf.mxu0
  %v1000 = vpop.f32.mrf.mxu0
  %v1001 = vadd.f32 0.0, %v1000
  %v1002 = vpop.f32.mrf.mxu0
  %1003 = vmatprep.mubr.bf16.mxu0 %v900
  %1004 = vmatmul.mubr.bf16.gmra.mxu0 %v899
  %v1005 = vpop.f32.mrf.mxu0
  %v1006 = vadd.f32 0.0, %v1005
  %v1007 = vpop.f32.mrf.mxu0
  %v1008 = vpop.f32.mrf.mxu0
  %v1009 = vadd.f32 0.0, %v1008
  %v1010 = vpop.f32.mrf.mxu0
  %1011 = vmatprep.mubr.bf16.mxu0 %v904
  %1012 = vmatmul.mubr.bf16.gmra.mxu0 %v903
  %v1013 = vpop.f32.mrf.mxu0
  %v1014 = vadd.f32 0.0, %v1013
  %v1015 = vpop.f32.mrf.mxu0
  %v1016 = vpop.f32.mrf.mxu0
  %v1017 = vadd.f32 0.0, %v1016
  %v1018 = vpop.f32.mrf.mxu0
  %1019 = vmatprep.mubr.bf16.mxu0 %v908
  %1020 = vmatmul.mubr.bf16.gmra.mxu0 %v907
  %v1021 = vpop.f32.mrf.mxu0
  %v1022 = vadd.f32 0.0, %v1021
  %v1023 = vpop.f32.mrf.mxu0
  %v1024 = vpop.f32.mrf.mxu0
  %v1025 = vadd.f32 0.0, %v1024
  %v1026 = vpop.f32.mrf.mxu0
  %1027 = vmatprep.mubr.bf16.mxu0 %v912
  %1028 = vmatmul.mubr.bf16.gmra.mxu0 %v911
  %v1029 = vpop.f32.mrf.mxu0
  %v1030 = vadd.f32 0.0, %v1029
  %v1031 = vpop.f32.mrf.mxu0
  %v1032 = vpop.f32.mrf.mxu0
  %v1033 = vadd.f32 0.0, %v1032
  %v1034 = vpop.f32.mrf.mxu0
  %1035 = vmatprep.mubr.bf16.mxu0 %v916
  %1036 = vmatmul.mubr.bf16.gmra.mxu0 %v915
  %v1037 = vpop.f32.mrf.mxu0
  %v1038 = vadd.f32 0.0, %v1037
  %v1039 = vpop.f32.mrf.mxu0
  %v1040 = vpop.f32.mrf.mxu0
  %v1041 = vadd.f32 0.0, %v1040
  %v1042 = vpop.f32.mrf.mxu0
  %1043 = vmatprep.mubr.bf16.mxu0 %v920
  %1044 = vmatmul.mubr.bf16.gmra.mxu0 %v919
  %v1045 = vpop.f32.mrf.mxu0
  %v1046 = vadd.f32 0.0, %v1045
  %v1047 = vpop.f32.mrf.mxu0
  %v1048 = vpop.f32.mrf.mxu0
  %v1049 = vadd.f32 0.0, %v1048
  %v1050 = vpop.f32.mrf.mxu0
  %1051 = vdwg.mxu0
  %1052 = vmatprep.subr.bf16.mxu0 0
  %1053 = vmatpush1.bf16.msra.mxu0 %v786
  %1054 = vmatprep.subr.bf16.mxu0 0
  %1055 = vmatpush1.bf16.msra.mxu0 %v785
  %1056 = vmatprep.subr.bf16.mxu0 0
  %1057 = vmatpush1.bf16.msra.mxu0 %v784
  %1058 = vmatprep.subr.bf16.mxu0 0
  %1059 = vmatpush1.bf16.msra.mxu0 %v783
  %1060 = vmatprep.subr.bf16.mxu0 0
  %1061 = vmatpush1.bf16.msra.mxu0 %v782
  %1062 = vmatprep.subr.bf16.mxu0 0
  %1063 = vmatpush1.bf16.msra.mxu0 %v781
  %1064 = vmatprep.subr.bf16.mxu0 0
  %1065 = vmatpush1.bf16.msra.mxu0 %v780
  %1066 = vmatprep.subr.bf16.mxu0 0
  %1067 = vmatpush1.bf16.msra.mxu0 %v779
  %1068 = vmatprep.subr.bf16.mxu0 0
  %1069 = vmatpush2.bf16.msra.mxu0 %v794
  %1070 = vmatprep.subr.bf16.mxu0 0
  %1071 = vmatpush2.bf16.msra.mxu0 %v793
  %1072 = vmatprep.subr.bf16.mxu0 0
  %1073 = vmatpush2.bf16.msra.mxu0 %v792
  %1074 = vmatprep.subr.bf16.mxu0 0
  %1075 = vmatpush2.bf16.msra.mxu0 %v791
  %1076 = vmatprep.subr.bf16.mxu0 0
  %1077 = vmatpush2.bf16.msra.mxu0 %v790
  %1078 = vmatprep.subr.bf16.mxu0 0
  %1079 = vmatpush2.bf16.msra.mxu0 %v789
  %1080 = vmatprep.subr.bf16.mxu0 0
  %1081 = vmatpush2.bf16.msra.mxu0 %v788
  %1082 = vmatprep.subr.bf16.mxu0 0
  %1083 = vmatpush2.bf16.msra.mxu0 %v787
  %1084 = vmatprep.mubr.bf16.mxu0 %v894
  %1085 = vmatmul.mubr.bf16.gmra.mxu0 %v893
  %v1086 = vpop.f32.mrf.mxu0
  %v1087 = vadd.f32 %v990, %v1086
  %v1088 = vpop.f32.mrf.mxu0
  %v1089 = vpop.f32.mrf.mxu0
  %v1090 = vadd.f32 %v993, %v1089
  %v1091 = vpop.f32.mrf.mxu0
  %1092 = vmatprep.mubr.bf16.mxu0 %v898
  %1093 = vmatmul.mubr.bf16.gmra.mxu0 %v897
  %v1094 = vpop.f32.mrf.mxu0
  %v1095 = vadd.f32 %v998, %v1094
  %v1096 = vpop.f32.mrf.mxu0
  %v1097 = vpop.f32.mrf.mxu0
  %v1098 = vadd.f32 %v1001, %v1097
  %v1099 = vpop.f32.mrf.mxu0
  %1100 = vmatprep.mubr.bf16.mxu0 %v902
  %1101 = vmatmul.mubr.bf16.gmra.mxu0 %v901
  %v1102 = vpop.f32.mrf.mxu0
  %v1103 = vadd.f32 %v1006, %v1102
  %v1104 = vpop.f32.mrf.mxu0
  %v1105 = vpop.f32.mrf.mxu0
  %v1106 = vadd.f32 %v1009, %v1105
  %v1107 = vpop.f32.mrf.mxu0
  %1108 = vmatprep.mubr.bf16.mxu0 %v906
  %1109 = vmatmul.mubr.bf16.gmra.mxu0 %v905
  %v1110 = vpop.f32.mrf.mxu0
  %v1111 = vadd.f32 %v1014, %v1110
  %v1112 = vpop.f32.mrf.mxu0
  %v1113 = vpop.f32.mrf.mxu0
  %v1114 = vadd.f32 %v1017, %v1113
  %v1115 = vpop.f32.mrf.mxu0
  %1116 = vmatprep.mubr.bf16.mxu0 %v910
  %1117 = vmatmul.mubr.bf16.gmra.mxu0 %v909
  %v1118 = vpop.f32.mrf.mxu0
  %v1119 = vadd.f32 %v1022, %v1118
  %v1120 = vpop.f32.mrf.mxu0
  %v1121 = vpop.f32.mrf.mxu0
  %v1122 = vadd.f32 %v1025, %v1121
  %v1123 = vpop.f32.mrf.mxu0
  %1124 = vmatprep.mubr.bf16.mxu0 %v914
  %1125 = vmatmul.mubr.bf16.gmra.mxu0 %v913
  %v1126 = vpop.f32.mrf.mxu0
  %v1127 = vadd.f32 %v1030, %v1126
  %v1128 = vpop.f32.mrf.mxu0
  %v1129 = vpop.f32.mrf.mxu0
  %v1130 = vadd.f32 %v1033, %v1129
  %v1131 = vpop.f32.mrf.mxu0
  %1132 = vmatprep.mubr.bf16.mxu0 %v918
  %1133 = vmatmul.mubr.bf16.gmra.mxu0 %v917
  %v1134 = vpop.f32.mrf.mxu0
  %v1135 = vadd.f32 %v1038, %v1134
  %v1136 = vpop.f32.mrf.mxu0
  %v1137 = vpop.f32.mrf.mxu0
  %v1138 = vadd.f32 %v1041, %v1137
  %v1139 = vpop.f32.mrf.mxu0
  %1140 = vmatprep.mubr.bf16.mxu0 %v922
  %1141 = vmatmul.mubr.bf16.gmra.mxu0 %v921
  %v1142 = vpop.f32.mrf.mxu0
  %v1143 = vadd.f32 %v1046, %v1142
  %v1144 = vpop.f32.mrf.mxu0
  %v1145 = vpop.f32.mrf.mxu0
  %v1146 = vadd.f32 %v1049, %v1145
  %v1147 = vpop.f32.mrf.mxu0
  %1148 = vdwg.mxu0
  %v1149 = vpack.c.bf16 %v1090, %v1087
  %v1150 = vpack.c.bf16 %v1098, %v1095
  %v1151 = vpack.c.bf16 %v1106, %v1103
  %v1152 = vpack.c.bf16 %v1114, %v1111
  %v1153 = vpack.c.bf16 %v1122, %v1119
  %v1154 = vpack.c.bf16 %v1130, %v1127
  %v1155 = vpack.c.bf16 %v1138, %v1135
  %v1156 = vpack.c.bf16 %v1146, %v1143
  %v1157 = vld [vmem:[%s4] sm:$0xf]
  %v1158 = vld [vmem:[%s4 + $0x4] sm:$0xf]
  %v1159 = vld [vmem:[%s5] sm:$0x1]
  %v1161 = vlaneseq
  %v1162 = vshrl.u32 %v1161, 7
  %v1163 = vsub.s32 0, %v1162
  %v1164 = vrot.slane %v1159, %v1163
  %v1168 = vunpack.c.l.b16 %v1157
  %v1169 = vunpack.c.l.b16 %v1158
  %v1170 = vpack.c.b16 %v1169, %v1168
  %vm1172 = vcmask 130048
  %v1174 = vsel %vm1172, %v1149, 0
  %v1177 = vsel %vm1172, %v1150, 0
  %v1180 = vsel %vm1172, %v1151, 0
  %v1183 = vsel %vm1172, %v1152, 0
  %v1186 = vsel %vm1172, %v1153, 0
  %v1189 = vsel %vm1172, %v1154, 0
  %v1192 = vsel %vm1172, %v1155, 0
  %v1195 = vsel %vm1172, %v1156, 0
  %1197 = vmatprep.subr.bf16.mxu0 0
  %1198 = vmatpush1.bf16.msra.mxu0 0
  %1199 = vmatprep.subr.bf16.mxu0 0
  %1200 = vmatpush1.bf16.msra.mxu0 0
  %1201 = vmatprep.subr.bf16.mxu0 0
  %1202 = vmatpush1.bf16.msra.mxu0 0
  %1203 = vmatprep.subr.bf16.mxu0 0
  %1204 = vmatpush1.bf16.msra.mxu0 0
  %1205 = vmatprep.subr.bf16.mxu0 0
  %1206 = vmatpush1.bf16.msra.mxu0 0
  %1207 = vmatprep.subr.bf16.mxu0 0
  %1208 = vmatpush1.bf16.msra.mxu0 0
  %1209 = vmatprep.subr.bf16.mxu0 0
  %1210 = vmatpush1.bf16.msra.mxu0 0
  %1211 = vmatprep.subr.bf16.mxu0 0
  %1212 = vmatpush1.bf16.msra.mxu0 %v1170
  %1213 = vmatprep.subr.bf16.mxu0 0
  %1214 = vmatpush2.bf16.msra.mxu0 0
  %1215 = vmatprep.subr.bf16.mxu0 0
  %1216 = vmatpush2.bf16.msra.mxu0 0
  %1217 = vmatprep.subr.bf16.mxu0 0
  %1218 = vmatpush2.bf16.msra.mxu0 0
  %1219 = vmatprep.subr.bf16.mxu0 0
  %1220 = vmatpush2.bf16.msra.mxu0 0
  %1221 = vmatprep.subr.bf16.mxu0 0
  %1222 = vmatpush2.bf16.msra.mxu0 0
  %1223 = vmatprep.subr.bf16.mxu0 0
  %1224 = vmatpush2.bf16.msra.mxu0 0
  %1225 = vmatprep.subr.bf16.mxu0 0
  %1226 = vmatpush2.bf16.msra.mxu0 0
  %1227 = vmatprep.subr.bf16.mxu0 0
  %1228 = vmatpush2.bf16.msra.mxu0 0
  %1229 = vmatprep.mubr.bf16.mxu0 0
  %1230 = vmatmul.mubr.bf16.gmra.mxu0 %v1174
  %v1231 = vpop.f32.mrf.mxu0
  %v1232 = vadd.f32 %v1164, %v1231
  %v1233 = vpop.f32.mrf.mxu0
  %v1234 = vpop.f32.mrf.mxu0
  %v1235 = vadd.f32 %v1164, %v1234
  %v1236 = vpop.f32.mrf.mxu0
  %1237 = vmatprep.mubr.bf16.mxu0 0
  %1238 = vmatmul.mubr.bf16.gmra.mxu0 %v1177
  %v1239 = vpop.f32.mrf.mxu0
  %v1240 = vadd.f32 %v1164, %v1239
  %v1241 = vpop.f32.mrf.mxu0
  %v1242 = vpop.f32.mrf.mxu0
  %v1243 = vadd.f32 %v1164, %v1242
  %v1244 = vpop.f32.mrf.mxu0
  %1245 = vmatprep.mubr.bf16.mxu0 0
  %1246 = vmatmul.mubr.bf16.gmra.mxu0 %v1180
  %v1247 = vpop.f32.mrf.mxu0
  %v1248 = vadd.f32 %v1164, %v1247
  %v1249 = vpop.f32.mrf.mxu0
  %v1250 = vpop.f32.mrf.mxu0
  %v1251 = vadd.f32 %v1164, %v1250
  %v1252 = vpop.f32.mrf.mxu0
  %1253 = vmatprep.mubr.bf16.mxu0 0
  %1254 = vmatmul.mubr.bf16.gmra.mxu0 %v1183
  %v1255 = vpop.f32.mrf.mxu0
  %v1256 = vadd.f32 %v1164, %v1255
  %v1257 = vpop.f32.mrf.mxu0
  %v1258 = vpop.f32.mrf.mxu0
  %v1259 = vadd.f32 %v1164, %v1258
  %v1260 = vpop.f32.mrf.mxu0
  %1261 = vmatprep.mubr.bf16.mxu0 0
  %1262 = vmatmul.mubr.bf16.gmra.mxu0 %v1186
  %v1263 = vpop.f32.mrf.mxu0
  %v1264 = vadd.f32 %v1164, %v1263
  %v1265 = vpop.f32.mrf.mxu0
  %v1266 = vpop.f32.mrf.mxu0
  %v1267 = vadd.f32 %v1164, %v1266
  %v1268 = vpop.f32.mrf.mxu0
  %1269 = vmatprep.mubr.bf16.mxu0 0
  %1270 = vmatmul.mubr.bf16.gmra.mxu0 %v1189
  %v1271 = vpop.f32.mrf.mxu0
  %v1272 = vadd.f32 %v1164, %v1271
  %v1273 = vpop.f32.mrf.mxu0
  %v1274 = vpop.f32.mrf.mxu0
  %v1275 = vadd.f32 %v1164, %v1274
  %v1276 = vpop.f32.mrf.mxu0
  %1277 = vmatprep.mubr.bf16.mxu0 0
  %1278 = vmatmul.mubr.bf16.gmra.mxu0 %v1192
  %v1279 = vpop.f32.mrf.mxu0
  %v1280 = vadd.f32 %v1164, %v1279
  %v1281 = vpop.f32.mrf.mxu0
  %v1282 = vpop.f32.mrf.mxu0
  %v1283 = vadd.f32 %v1164, %v1282
  %v1284 = vpop.f32.mrf.mxu0
  %1285 = vmatprep.mubr.bf16.mxu0 0
  %1286 = vmatmul.mubr.bf16.gmra.mxu0 %v1195
  %v1287 = vpop.f32.mrf.mxu0
  %v1288 = vadd.f32 %v1164, %v1287
  %v1289 = vpop.f32.mrf.mxu0
  %v1290 = vpop.f32.mrf.mxu0
  %v1291 = vadd.f32 %v1164, %v1290
  %v1292 = vpop.f32.mrf.mxu0
  %1293 = vdwg.mxu0
  %v1294 = vmax.f32 %v1232, 0.0
  %v1295 = vmax.f32 %v1235, 0.0
  %v1296 = vmax.f32 %v1240, 0.0
  %v1297 = vmax.f32 %v1243, 0.0
  %v1298 = vmax.f32 %v1248, 0.0
  %v1299 = vmax.f32 %v1251, 0.0
  %v1300 = vmax.f32 %v1256, 0.0
  %v1301 = vmax.f32 %v1259, 0.0
  %v1302 = vmax.f32 %v1264, 0.0
  %v1303 = vmax.f32 %v1267, 0.0
  %v1304 = vmax.f32 %v1272, 0.0
  %v1305 = vmax.f32 %v1275, 0.0
  %v1306 = vmax.f32 %v1280, 0.0
  %v1307 = vmax.f32 %v1283, 0.0
  %v1308 = vmax.f32 %v1288, 0.0
  %v1309 = vmax.f32 %v1291, 0.0
  %v1310 = vpack.c.bf16 %v1295, %v1294
  %v1311 = vpack.c.bf16 %v1297, %v1296
  %v1312 = vpack.c.bf16 %v1299, %v1298
  %v1313 = vpack.c.bf16 %v1301, %v1300
  %v1314 = vpack.c.bf16 %v1303, %v1302
  %v1315 = vpack.c.bf16 %v1305, %v1304
  %v1316 = vpack.c.bf16 %v1307, %v1306
  %v1317 = vpack.c.bf16 %v1309, %v1308
  %v1318 = vld [vmem:[%s6] sm:$0xf]
  %v1319 = vld [vmem:[%s6 + $0x4] sm:$0xf]
  %v1320 = vld [vmem:[%s7] sm:$0x1]
  %v1322 = vlaneseq
  %v1323 = vshrl.u32 %v1322, 7
  %v1324 = vsub.s32 0, %v1323
  %v1325 = vrot.slane %v1320, %v1324
  %v1329 = vunpack.c.l.b16 %v1318
  %v1330 = vunpack.c.l.b16 %v1319
  %v1331 = vpack.c.b16 %v1330, %v1329
  %v1334 = vsel %vm1172, %v1310, 0
  %v1337 = vsel %vm1172, %v1311, 0
  %v1340 = vsel %vm1172, %v1312, 0
  %v1343 = vsel %vm1172, %v1313, 0
  %v1346 = vsel %vm1172, %v1314, 0
  %v1349 = vsel %vm1172, %v1315, 0
  %v1352 = vsel %vm1172, %v1316, 0
  %v1355 = vsel %vm1172, %v1317, 0
  %1357 = vmatprep.subr.bf16.mxu0 0
  %1358 = vmatpush1.bf16.msra.mxu0 0
  %1359 = vmatprep.subr.bf16.mxu0 0
  %1360 = vmatpush1.bf16.msra.mxu0 0
  %1361 = vmatprep.subr.bf16.mxu0 0
  %1362 = vmatpush1.bf16.msra.mxu0 0
  %1363 = vmatprep.subr.bf16.mxu0 0
  %1364 = vmatpush1.bf16.msra.mxu0 0
  %1365 = vmatprep.subr.bf16.mxu0 0
  %1366 = vmatpush1.bf16.msra.mxu0 0
  %1367 = vmatprep.subr.bf16.mxu0 0
  %1368 = vmatpush1.bf16.msra.mxu0 0
  %1369 = vmatprep.subr.bf16.mxu0 0
  %1370 = vmatpush1.bf16.msra.mxu0 0
  %1371 = vmatprep.subr.bf16.mxu0 0
  %1372 = vmatpush1.bf16.msra.mxu0 %v1331
  %1373 = vmatprep.subr.bf16.mxu0 0
  %1374 = vmatpush2.bf16.msra.mxu0 0
  %1375 = vmatprep.subr.bf16.mxu0 0
  %1376 = vmatpush2.bf16.msra.mxu0 0
  %1377 = vmatprep.subr.bf16.mxu0 0
  %1378 = vmatpush2.bf16.msra.mxu0 0
  %1379 = vmatprep.subr.bf16.mxu0 0
  %1380 = vmatpush2.bf16.msra.mxu0 0
  %1381 = vmatprep.subr.bf16.mxu0 0
  %1382 = vmatpush2.bf16.msra.mxu0 0
  %1383 = vmatprep.subr.bf16.mxu0 0
  %1384 = vmatpush2.bf16.msra.mxu0 0
  %1385 = vmatprep.subr.bf16.mxu0 0
  %1386 = vmatpush2.bf16.msra.mxu0 0
  %1387 = vmatprep.subr.bf16.mxu0 0
  %1388 = vmatpush2.bf16.msra.mxu0 0
  %1389 = vmatprep.mubr.bf16.mxu0 0
  %1390 = vmatmul.mubr.bf16.gmra.mxu0 %v1334
  %v1391 = vpop.f32.mrf.mxu0
  %v1392 = vadd.f32 %v1325, %v1391
  %v1393 = vpop.f32.mrf.mxu0
  %v1394 = vpop.f32.mrf.mxu0
  %v1395 = vadd.f32 %v1325, %v1394
  %v1396 = vpop.f32.mrf.mxu0
  %1397 = vmatprep.mubr.bf16.mxu0 0
  %1398 = vmatmul.mubr.bf16.gmra.mxu0 %v1337
  %v1399 = vpop.f32.mrf.mxu0
  %v1400 = vadd.f32 %v1325, %v1399
  %v1401 = vpop.f32.mrf.mxu0
  %v1402 = vpop.f32.mrf.mxu0
  %v1403 = vadd.f32 %v1325, %v1402
  %v1404 = vpop.f32.mrf.mxu0
  %1405 = vmatprep.mubr.bf16.mxu0 0
  %1406 = vmatmul.mubr.bf16.gmra.mxu0 %v1340
  %v1407 = vpop.f32.mrf.mxu0
  %v1408 = vadd.f32 %v1325, %v1407
  %v1409 = vpop.f32.mrf.mxu0
  %v1410 = vpop.f32.mrf.mxu0
  %v1411 = vadd.f32 %v1325, %v1410
  %v1412 = vpop.f32.mrf.mxu0
  %1413 = vmatprep.mubr.bf16.mxu0 0
  %1414 = vmatmul.mubr.bf16.gmra.mxu0 %v1343
  %v1415 = vpop.f32.mrf.mxu0
  %v1416 = vadd.f32 %v1325, %v1415
  %v1417 = vpop.f32.mrf.mxu0
  %v1418 = vpop.f32.mrf.mxu0
  %v1419 = vadd.f32 %v1325, %v1418
  %v1420 = vpop.f32.mrf.mxu0
  %1421 = vmatprep.mubr.bf16.mxu0 0
  %1422 = vmatmul.mubr.bf16.gmra.mxu0 %v1346
  %v1423 = vpop.f32.mrf.mxu0
  %v1424 = vadd.f32 %v1325, %v1423
  %v1425 = vpop.f32.mrf.mxu0
  %v1426 = vpop.f32.mrf.mxu0
  %v1427 = vadd.f32 %v1325, %v1426
  %v1428 = vpop.f32.mrf.mxu0
  %1429 = vmatprep.mubr.bf16.mxu0 0
  %1430 = vmatmul.mubr.bf16.gmra.mxu0 %v1349
  %v1431 = vpop.f32.mrf.mxu0
  %v1432 = vadd.f32 %v1325, %v1431
  %v1433 = vpop.f32.mrf.mxu0
  %v1434 = vpop.f32.mrf.mxu0
  %v1435 = vadd.f32 %v1325, %v1434
  %v1436 = vpop.f32.mrf.mxu0
  %1437 = vmatprep.mubr.bf16.mxu0 0
  %1438 = vmatmul.mubr.bf16.gmra.mxu0 %v1352
  %v1439 = vpop.f32.mrf.mxu0
  %v1440 = vadd.f32 %v1325, %v1439
  %v1441 = vpop.f32.mrf.mxu0
  %v1442 = vpop.f32.mrf.mxu0
  %v1443 = vadd.f32 %v1325, %v1442
  %v1444 = vpop.f32.mrf.mxu0
  %1445 = vmatprep.mubr.bf16.mxu0 0
  %1446 = vmatmul.mubr.bf16.gmra.mxu0 %v1355
  %v1447 = vpop.f32.mrf.mxu0
  %v1448 = vadd.f32 %v1325, %v1447
  %v1449 = vpop.f32.mrf.mxu0
  %v1450 = vpop.f32.mrf.mxu0
  %v1451 = vadd.f32 %v1325, %v1450
  %v1452 = vpop.f32.mrf.mxu0
  %1453 = vdwg.mxu0
  %v1454 = vmax.f32 %v1392, 0.0
  %v1455 = vmax.f32 %v1395, 0.0
  %v1456 = vmax.f32 %v1400, 0.0
  %v1457 = vmax.f32 %v1403, 0.0
  %v1458 = vmax.f32 %v1408, 0.0
  %v1459 = vmax.f32 %v1411, 0.0
  %v1460 = vmax.f32 %v1416, 0.0
  %v1461 = vmax.f32 %v1419, 0.0
  %v1462 = vmax.f32 %v1424, 0.0
  %v1463 = vmax.f32 %v1427, 0.0
  %v1464 = vmax.f32 %v1432, 0.0
  %v1465 = vmax.f32 %v1435, 0.0
  %v1466 = vmax.f32 %v1440, 0.0
  %v1467 = vmax.f32 %v1443, 0.0
  %v1468 = vmax.f32 %v1448, 0.0
  %v1469 = vmax.f32 %v1451, 0.0
  %v1470 = vpack.c.bf16 %v1455, %v1454
  %v1471 = vpack.c.bf16 %v1457, %v1456
  %v1472 = vpack.c.bf16 %v1459, %v1458
  %v1473 = vpack.c.bf16 %v1461, %v1460
  %v1474 = vpack.c.bf16 %v1463, %v1462
  %v1475 = vpack.c.bf16 %v1465, %v1464
  %v1476 = vpack.c.bf16 %v1467, %v1466
  %v1477 = vpack.c.bf16 %v1469, %v1468
  %v1478 = vld [vmem:[%s8] sm:$0xf]
  %v1479 = vld [vmem:[%s8 + $0x4] sm:$0xf]
  %v1480 = vld [vmem:[%s8 + $0x8] sm:$0xf]
  %v1481 = vld [vmem:[%s8 + $0xc] sm:$0xf]
  %v1482 = vld [vmem:[%s9] sm:$0x1]
  %v1484 = vlaneseq
  %v1485 = vshrl.u32 %v1484, 7
  %v1486 = vsub.s32 0, %v1485
  %v1487 = vrot.slane %v1482, %v1486
  %v1493 = vunpack.c.l.b16 %v1478
  %v1494 = vunpack.c.l.b16 %v1479
  %v1495 = vunpack.c.l.b16 %v1480
  %v1496 = vunpack.c.l.b16 %v1481
  %v1497 = vpack.c.b16 %v1494, %v1493
  %v1498 = vpack.c.b16 %v1496, %v1495
  %vm1501 = vcmask 261120
  %v1503 = vsel %vm1501, %v1470, 0
  %v1506 = vsel %vm1501, %v1471, 0
  %v1509 = vsel %vm1501, %v1472, 0
  %v1512 = vsel %vm1501, %v1473, 0
  %v1515 = vsel %vm1501, %v1474, 0
  %v1518 = vsel %vm1501, %v1475, 0
  %v1521 = vsel %vm1501, %v1476, 0
  %v1524 = vsel %vm1501, %v1477, 0
  %1526 = vmatprep.subr.bf16.mxu0 0
  %1527 = vmatpush1.bf16.msra.mxu0 0
  %1528 = vmatprep.subr.bf16.mxu0 0
  %1529 = vmatpush1.bf16.msra.mxu0 0
  %1530 = vmatprep.subr.bf16.mxu0 0
  %1531 = vmatpush1.bf16.msra.mxu0 0
  %1532 = vmatprep.subr.bf16.mxu0 0
  %1533 = vmatpush1.bf16.msra.mxu0 0
  %1534 = vmatprep.subr.bf16.mxu0 0
  %1535 = vmatpush1.bf16.msra.mxu0 0
  %1536 = vmatprep.subr.bf16.mxu0 0
  %1537 = vmatpush1.bf16.msra.mxu0 0
  %1538 = vmatprep.subr.bf16.mxu0 0
  %1539 = vmatpush1.bf16.msra.mxu0 %v1498
  %1540 = vmatprep.subr.bf16.mxu0 0
  %1541 = vmatpush1.bf16.msra.mxu0 %v1497
  %1542 = vmatprep.subr.bf16.mxu0 0
  %1543 = vmatpush2.bf16.msra.mxu0 0
  %1544 = vmatprep.subr.bf16.mxu0 0
  %1545 = vmatpush2.bf16.msra.mxu0 0
  %1546 = vmatprep.subr.bf16.mxu0 0
  %1547 = vmatpush2.bf16.msra.mxu0 0
  %1548 = vmatprep.subr.bf16.mxu0 0
  %1549 = vmatpush2.bf16.msra.mxu0 0
  %1550 = vmatprep.subr.bf16.mxu0 0
  %1551 = vmatpush2.bf16.msra.mxu0 0
  %1552 = vmatprep.subr.bf16.mxu0 0
  %1553 = vmatpush2.bf16.msra.mxu0 0
  %1554 = vmatprep.subr.bf16.mxu0 0
  %1555 = vmatpush2.bf16.msra.mxu0 0
  %1556 = vmatprep.subr.bf16.mxu0 0
  %1557 = vmatpush2.bf16.msra.mxu0 0
  %1558 = vmatprep.mubr.bf16.mxu0 0
  %1559 = vmatmul.mubr.bf16.gmra.mxu0 %v1503
  %v1560 = vpop.f32.mrf.mxu0
  %v1561 = vadd.f32 %v1487, %v1560
  %v1562 = vpop.f32.mrf.mxu0
  %v1563 = vpop.f32.mrf.mxu0
  %v1564 = vadd.f32 %v1487, %v1563
  %v1565 = vpop.f32.mrf.mxu0
  %1566 = vmatprep.mubr.bf16.mxu0 0
  %1567 = vmatmul.mubr.bf16.gmra.mxu0 %v1506
  %v1568 = vpop.f32.mrf.mxu0
  %v1569 = vadd.f32 %v1487, %v1568
  %v1570 = vpop.f32.mrf.mxu0
  %v1571 = vpop.f32.mrf.mxu0
  %v1572 = vadd.f32 %v1487, %v1571
  %v1573 = vpop.f32.mrf.mxu0
  %1574 = vmatprep.mubr.bf16.mxu0 0
  %1575 = vmatmul.mubr.bf16.gmra.mxu0 %v1509
  %v1576 = vpop.f32.mrf.mxu0
  %v1577 = vadd.f32 %v1487, %v1576
  %v1578 = vpop.f32.mrf.mxu0
  %v1579 = vpop.f32.mrf.mxu0
  %v1580 = vadd.f32 %v1487, %v1579
  %v1581 = vpop.f32.mrf.mxu0
  %1582 = vmatprep.mubr.bf16.mxu0 0
  %1583 = vmatmul.mubr.bf16.gmra.mxu0 %v1512
  %v1584 = vpop.f32.mrf.mxu0
  %v1585 = vadd.f32 %v1487, %v1584
  %v1586 = vpop.f32.mrf.mxu0
  %v1587 = vpop.f32.mrf.mxu0
  %v1588 = vadd.f32 %v1487, %v1587
  %v1589 = vpop.f32.mrf.mxu0
  %1590 = vmatprep.mubr.bf16.mxu0 0
  %1591 = vmatmul.mubr.bf16.gmra.mxu0 %v1515
  %v1592 = vpop.f32.mrf.mxu0
  %v1593 = vadd.f32 %v1487, %v1592
  %v1594 = vpop.f32.mrf.mxu0
  %v1595 = vpop.f32.mrf.mxu0
  %v1596 = vadd.f32 %v1487, %v1595
  %v1597 = vpop.f32.mrf.mxu0
  %1598 = vmatprep.mubr.bf16.mxu0 0
  %1599 = vmatmul.mubr.bf16.gmra.mxu0 %v1518
  %v1600 = vpop.f32.mrf.mxu0
  %v1601 = vadd.f32 %v1487, %v1600
  %v1602 = vpop.f32.mrf.mxu0
  %v1603 = vpop.f32.mrf.mxu0
  %v1604 = vadd.f32 %v1487, %v1603
  %v1605 = vpop.f32.mrf.mxu0
  %1606 = vmatprep.mubr.bf16.mxu0 0
  %1607 = vmatmul.mubr.bf16.gmra.mxu0 %v1521
  %v1608 = vpop.f32.mrf.mxu0
  %v1609 = vadd.f32 %v1487, %v1608
  %v1610 = vpop.f32.mrf.mxu0
  %v1611 = vpop.f32.mrf.mxu0
  %v1612 = vadd.f32 %v1487, %v1611
  %v1613 = vpop.f32.mrf.mxu0
  %1614 = vmatprep.mubr.bf16.mxu0 0
  %1615 = vmatmul.mubr.bf16.gmra.mxu0 %v1524
  %v1616 = vpop.f32.mrf.mxu0
  %v1617 = vadd.f32 %v1487, %v1616
  %v1618 = vpop.f32.mrf.mxu0
  %v1619 = vpop.f32.mrf.mxu0
  %v1620 = vadd.f32 %v1487, %v1619
  %v1621 = vpop.f32.mrf.mxu0
  %1622 = vdwg.mxu0
  %v1623 = vmax.f32 %v1561, 0.0
  %v1624 = vmax.f32 %v1564, 0.0
  %v1625 = vmax.f32 %v1569, 0.0
  %v1626 = vmax.f32 %v1572, 0.0
  %v1627 = vmax.f32 %v1577, 0.0
  %v1628 = vmax.f32 %v1580, 0.0
  %v1629 = vmax.f32 %v1585, 0.0
  %v1630 = vmax.f32 %v1588, 0.0
  %v1631 = vmax.f32 %v1593, 0.0
  %v1632 = vmax.f32 %v1596, 0.0
  %v1633 = vmax.f32 %v1601, 0.0
  %v1634 = vmax.f32 %v1604, 0.0
  %v1635 = vmax.f32 %v1609, 0.0
  %v1636 = vmax.f32 %v1612, 0.0
  %v1637 = vmax.f32 %v1617, 0.0
  %v1638 = vmax.f32 %v1620, 0.0
  %v1639 = vld [vmem:[%s10] sm:$0xf]
  %v1640 = vld [vmem:[%s10 + $0x4] sm:$0xf]
  %v1641 = vld [vmem:[%s10 + $0x8] sm:$0xf]
  %v1642 = vld [vmem:[%s10 + $0xc] sm:$0xf]
  %v1643 = vpack.c.bf16 %v1624, %v1623
  %v1644 = vpack.c.bf16 %v1626, %v1625
  %v1645 = vpack.c.bf16 %v1628, %v1627
  %v1646 = vpack.c.bf16 %v1630, %v1629
  %v1647 = vpack.c.bf16 %v1632, %v1631
  %v1648 = vpack.c.bf16 %v1634, %v1633
  %v1649 = vpack.c.bf16 %v1636, %v1635
  %v1650 = vpack.c.bf16 %v1638, %v1637
  %v1651 = vld [vmem:[%s11] sm:$0xf]
  %v1652 = vld [vmem:[%s11 + $0x4] sm:$0xf]
  %v1653 = vld [vmem:[%s11 + $0x8] sm:$0xf]
  %v1654 = vld [vmem:[%s11 + $0xc] sm:$0xf]
  %v1659 = vunpack.c.l.b16 %v1651
  %v1660 = vunpack.c.l.b16 %v1652
  %v1661 = vunpack.c.l.b16 %v1653
  %v1662 = vunpack.c.l.b16 %v1654
  %v1663 = vpack.c.b16 %v1660, %v1659
  %v1664 = vpack.c.b16 %v1662, %v1661
  %v1668 = vsel %vm1501, %v1643, 0
  %v1671 = vsel %vm1501, %v1644, 0
  %v1674 = vsel %vm1501, %v1645, 0
  %v1677 = vsel %vm1501, %v1646, 0
  %v1680 = vsel %vm1501, %v1647, 0
  %v1683 = vsel %vm1501, %v1648, 0
  %v1686 = vsel %vm1501, %v1649, 0
  %v1689 = vsel %vm1501, %v1650, 0
  %1691 = vmatprep.subr.bf16.mxu0 0
  %1692 = vmatpush1.bf16.msra.mxu0 0
  %1693 = vmatprep.subr.bf16.mxu0 0
  %1694 = vmatpush1.bf16.msra.mxu0 0
  %1695 = vmatprep.subr.bf16.mxu0 0
  %1696 = vmatpush1.bf16.msra.mxu0 0
  %1697 = vmatprep.subr.bf16.mxu0 0
  %1698 = vmatpush1.bf16.msra.mxu0 0
  %1699 = vmatprep.subr.bf16.mxu0 0
  %1700 = vmatpush1.bf16.msra.mxu0 0
  %1701 = vmatprep.subr.bf16.mxu0 0
  %1702 = vmatpush1.bf16.msra.mxu0 0
  %1703 = vmatprep.subr.bf16.mxu0 0
  %1704 = vmatpush1.bf16.msra.mxu0 %v1664
  %1705 = vmatprep.subr.bf16.mxu0 0
  %1706 = vmatpush1.bf16.msra.mxu0 %v1663
  %1707 = vmatprep.subr.bf16.mxu0 0
  %1708 = vmatpush2.bf16.msra.mxu0 0
  %1709 = vmatprep.subr.bf16.mxu0 0
  %1710 = vmatpush2.bf16.msra.mxu0 0
  %1711 = vmatprep.subr.bf16.mxu0 0
  %1712 = vmatpush2.bf16.msra.mxu0 0
  %1713 = vmatprep.subr.bf16.mxu0 0
  %1714 = vmatpush2.bf16.msra.mxu0 0
  %1715 = vmatprep.subr.bf16.mxu0 0
  %1716 = vmatpush2.bf16.msra.mxu0 0
  %1717 = vmatprep.subr.bf16.mxu0 0
  %1718 = vmatpush2.bf16.msra.mxu0 0
  %1719 = vmatprep.subr.bf16.mxu0 0
  %1720 = vmatpush2.bf16.msra.mxu0 0
  %1721 = vmatprep.subr.bf16.mxu0 0
  %1722 = vmatpush2.bf16.msra.mxu0 0
  %1723 = vmatprep.mubr.bf16.mxu0 0
  %1724 = vmatmul.mubr.bf16.gmra.mxu0 %v1668
  %v1725 = vpop.f32.mrf.mxu0
  %v1726 = vadd.f32 0.0, %v1725
  %v1727 = vpop.f32.mrf.mxu0
  %v1728 = vpop.f32.mrf.mxu0
  %v1729 = vadd.f32 0.0, %v1728
  %v1730 = vpop.f32.mrf.mxu0
  %1731 = vmatprep.mubr.bf16.mxu0 0
  %1732 = vmatmul.mubr.bf16.gmra.mxu0 %v1671
  %v1733 = vpop.f32.mrf.mxu0
  %v1734 = vadd.f32 0.0, %v1733
  %v1735 = vpop.f32.mrf.mxu0
  %v1736 = vpop.f32.mrf.mxu0
  %v1737 = vadd.f32 0.0, %v1736
  %v1738 = vpop.f32.mrf.mxu0
  %1739 = vmatprep.mubr.bf16.mxu0 0
  %1740 = vmatmul.mubr.bf16.gmra.mxu0 %v1674
  %v1741 = vpop.f32.mrf.mxu0
  %v1742 = vadd.f32 0.0, %v1741
  %v1743 = vpop.f32.mrf.mxu0
  %v1744 = vpop.f32.mrf.mxu0
  %v1745 = vadd.f32 0.0, %v1744
  %v1746 = vpop.f32.mrf.mxu0
  %1747 = vmatprep.mubr.bf16.mxu0 0
  %1748 = vmatmul.mubr.bf16.gmra.mxu0 %v1677
  %v1749 = vpop.f32.mrf.mxu0
  %v1750 = vadd.f32 0.0, %v1749
  %v1751 = vpop.f32.mrf.mxu0
  %v1752 = vpop.f32.mrf.mxu0
  %v1753 = vadd.f32 0.0, %v1752
  %v1754 = vpop.f32.mrf.mxu0
  %1755 = vmatprep.mubr.bf16.mxu0 0
  %1756 = vmatmul.mubr.bf16.gmra.mxu0 %v1680
  %v1757 = vpop.f32.mrf.mxu0
  %v1758 = vadd.f32 0.0, %v1757
  %v1759 = vpop.f32.mrf.mxu0
  %v1760 = vpop.f32.mrf.mxu0
  %v1761 = vadd.f32 0.0, %v1760
  %v1762 = vpop.f32.mrf.mxu0
  %1763 = vmatprep.mubr.bf16.mxu0 0
  %1764 = vmatmul.mubr.bf16.gmra.mxu0 %v1683
  %v1765 = vpop.f32.mrf.mxu0
  %v1766 = vadd.f32 0.0, %v1765
  %v1767 = vpop.f32.mrf.mxu0
  %v1768 = vpop.f32.mrf.mxu0
  %v1769 = vadd.f32 0.0, %v1768
  %v1770 = vpop.f32.mrf.mxu0
  %1771 = vmatprep.mubr.bf16.mxu0 0
  %1772 = vmatmul.mubr.bf16.gmra.mxu0 %v1686
  %v1773 = vpop.f32.mrf.mxu0
  %v1774 = vadd.f32 0.0, %v1773
  %v1775 = vpop.f32.mrf.mxu0
  %v1776 = vpop.f32.mrf.mxu0
  %v1777 = vadd.f32 0.0, %v1776
  %v1778 = vpop.f32.mrf.mxu0
  %1779 = vmatprep.mubr.bf16.mxu0 0
  %1780 = vmatmul.mubr.bf16.gmra.mxu0 %v1689
  %v1781 = vpop.f32.mrf.mxu0
  %v1782 = vadd.f32 0.0, %v1781
  %v1783 = vpop.f32.mrf.mxu0
  %v1784 = vpop.f32.mrf.mxu0
  %v1785 = vadd.f32 0.0, %v1784
  %v1786 = vpop.f32.mrf.mxu0
  %1787 = vdwg.mxu0
  %v1792 = vunpack.c.l.b16 %v1639
  %v1793 = vunpack.c.l.b16 %v1640
  %v1794 = vunpack.c.l.b16 %v1641
  %v1795 = vunpack.c.l.b16 %v1642
  %v1796 = vpack.c.b16 %v1793, %v1792
  %v1797 = vpack.c.b16 %v1795, %v1794
  %1800 = vmatprep.subr.bf16.mxu0 0
  %1801 = vmatpush1.bf16.msra.mxu0 0
  %1802 = vmatprep.subr.bf16.mxu0 0
  %1803 = vmatpush1.bf16.msra.mxu0 0
  %1804 = vmatprep.subr.bf16.mxu0 0
  %1805 = vmatpush1.bf16.msra.mxu0 0
  %1806 = vmatprep.subr.bf16.mxu0 0
  %1807 = vmatpush1.bf16.msra.mxu0 0
  %1808 = vmatprep.subr.bf16.mxu0 0
  %1809 = vmatpush1.bf16.msra.mxu0 0
  %1810 = vmatprep.subr.bf16.mxu0 0
  %1811 = vmatpush1.bf16.msra.mxu0 0
  %1812 = vmatprep.subr.bf16.mxu0 0
  %1813 = vmatpush1.bf16.msra.mxu0 %v1797
  %1814 = vmatprep.subr.bf16.mxu0 0
  %1815 = vmatpush1.bf16.msra.mxu0 %v1796
  %1816 = vmatprep.subr.bf16.mxu0 0
  %1817 = vmatpush2.bf16.msra.mxu0 0
  %1818 = vmatprep.subr.bf16.mxu0 0
  %1819 = vmatpush2.bf16.msra.mxu0 0
  %1820 = vmatprep.subr.bf16.mxu0 0
  %1821 = vmatpush2.bf16.msra.mxu0 0
  %1822 = vmatprep.subr.bf16.mxu0 0
  %1823 = vmatpush2.bf16.msra.mxu0 0
  %1824 = vmatprep.subr.bf16.mxu0 0
  %1825 = vmatpush2.bf16.msra.mxu0 0
  %1826 = vmatprep.subr.bf16.mxu0 0
  %1827 = vmatpush2.bf16.msra.mxu0 0
  %1828 = vmatprep.subr.bf16.mxu0 0
  %1829 = vmatpush2.bf16.msra.mxu0 0
  %1830 = vmatprep.subr.bf16.mxu0 0
  %1831 = vmatpush2.bf16.msra.mxu0 0
  %1832 = vmatprep.mubr.bf16.mxu0 0
  %1833 = vmatmul.mubr.bf16.gmra.mxu0 %v1503
  %v1834 = vpop.f32.mrf.mxu0
  %v1835 = vadd.f32 %v1726, %v1834
  %v1836 = vpop.f32.mrf.mxu0
  %v1837 = vpop.f32.mrf.mxu0
  %v1838 = vadd.f32 %v1729, %v1837
  %v1839 = vpop.f32.mrf.mxu0
  %1840 = vmatprep.mubr.bf16.mxu0 0
  %1841 = vmatmul.mubr.bf16.gmra.mxu0 %v1506
  %v1842 = vpop.f32.mrf.mxu0
  %v1843 = vadd.f32 %v1734, %v1842
  %v1844 = vpop.f32.mrf.mxu0
  %v1845 = vpop.f32.mrf.mxu0
  %v1846 = vadd.f32 %v1737, %v1845
  %v1847 = vpop.f32.mrf.mxu0
  %1848 = vmatprep.mubr.bf16.mxu0 0
  %1849 = vmatmul.mubr.bf16.gmra.mxu0 %v1509
  %v1850 = vpop.f32.mrf.mxu0
  %v1851 = vadd.f32 %v1742, %v1850
  %v1852 = vpop.f32.mrf.mxu0
  %v1853 = vpop.f32.mrf.mxu0
  %v1854 = vadd.f32 %v1745, %v1853
  %v1855 = vpop.f32.mrf.mxu0
  %1856 = vmatprep.mubr.bf16.mxu0 0
  %1857 = vmatmul.mubr.bf16.gmra.mxu0 %v1512
  %v1858 = vpop.f32.mrf.mxu0
  %v1859 = vadd.f32 %v1750, %v1858
  %v1860 = vpop.f32.mrf.mxu0
  %v1861 = vpop.f32.mrf.mxu0
  %v1862 = vadd.f32 %v1753, %v1861
  %v1863 = vpop.f32.mrf.mxu0
  %1864 = vmatprep.mubr.bf16.mxu0 0
  %1865 = vmatmul.mubr.bf16.gmra.mxu0 %v1515
  %v1866 = vpop.f32.mrf.mxu0
  %v1867 = vadd.f32 %v1758, %v1866
  %v1868 = vpop.f32.mrf.mxu0
  %v1869 = vpop.f32.mrf.mxu0
  %v1870 = vadd.f32 %v1761, %v1869
  %v1871 = vpop.f32.mrf.mxu0
  %1872 = vmatprep.mubr.bf16.mxu0 0
  %1873 = vmatmul.mubr.bf16.gmra.mxu0 %v1518
  %v1874 = vpop.f32.mrf.mxu0
  %v1875 = vadd.f32 %v1766, %v1874
  %v1876 = vpop.f32.mrf.mxu0
  %v1877 = vpop.f32.mrf.mxu0
  %v1878 = vadd.f32 %v1769, %v1877
  %v1879 = vpop.f32.mrf.mxu0
  %1880 = vmatprep.mubr.bf16.mxu0 0
  %1881 = vmatmul.mubr.bf16.gmra.mxu0 %v1521
  %v1882 = vpop.f32.mrf.mxu0
  %v1883 = vadd.f32 %v1774, %v1882
  %v1884 = vpop.f32.mrf.mxu0
  %v1885 = vpop.f32.mrf.mxu0
  %v1886 = vadd.f32 %v1777, %v1885
  %v1887 = vpop.f32.mrf.mxu0
  %1888 = vmatprep.mubr.bf16.mxu0 0
  %1889 = vmatmul.mubr.bf16.gmra.mxu0 %v1524
  %v1890 = vpop.f32.mrf.mxu0
  %v1891 = vadd.f32 %v1782, %v1890
  %v1892 = vpop.f32.mrf.mxu0
  %v1893 = vpop.f32.mrf.mxu0
  %v1894 = vadd.f32 %v1785, %v1893
  %v1895 = vpop.f32.mrf.mxu0
  %1896 = vdwg.mxu0
  %v1897 = vld [vmem:[%s12] sm:$0x1]
  %v1899 = vlaneseq
  %v1900 = vshrl.u32 %v1899, 7
  %v1901 = vsub.s32 0, %v1900
  %v1902 = vrot.slane %v1897, %v1901
  %v1904 = vadd.f32 %v1835, %v1902
  %v1905 = vadd.f32 %v1838, %v1902
  %v1906 = vadd.f32 %v1843, %v1902
  %v1907 = vadd.f32 %v1846, %v1902
  %v1908 = vadd.f32 %v1851, %v1902
  %v1909 = vadd.f32 %v1854, %v1902
  %v1910 = vadd.f32 %v1859, %v1902
  %v1911 = vadd.f32 %v1862, %v1902
  %v1912 = vadd.f32 %v1867, %v1902
  %v1913 = vadd.f32 %v1870, %v1902
  %v1914 = vadd.f32 %v1875, %v1902
  %v1915 = vadd.f32 %v1878, %v1902
  %v1916 = vadd.f32 %v1883, %v1902
  %v1917 = vadd.f32 %v1886, %v1902
  %v1918 = vadd.f32 %v1891, %v1902
  %v1919 = vadd.f32 %v1894, %v1902
  %v1920 = vlaneseq
  %v1921 = vand.u32 %v1920, 127
  %v1922 = vsub.f32 0.0, %v1904
  %v1923 = vsub.f32 0.0, %v1905
  %v1924 = vsub.f32 0.0, %v1906
  %v1925 = vsub.f32 0.0, %v1907
  %v1926 = vsub.f32 0.0, %v1908
  %v1927 = vsub.f32 0.0, %v1909
  %v1928 = vsub.f32 0.0, %v1910
  %v1929 = vsub.f32 0.0, %v1911
  %v1930 = vsub.f32 0.0, %v1912
  %v1931 = vsub.f32 0.0, %v1913
  %v1932 = vsub.f32 0.0, %v1914
  %v1933 = vsub.f32 0.0, %v1915
  %v1934 = vsub.f32 0.0, %v1916
  %v1935 = vsub.f32 0.0, %v1917
  %v1936 = vsub.f32 0.0, %v1918
  %v1937 = vsub.f32 0.0, %v1919
  %v1938 = vmul.f32 %v1922, 1.442695
  %v1939 = vpow.pop %v1938
  %v1940 = vmul.f32 %v1923, 1.442695
  %v1941 = vpow.pop %v1940
  %v1942 = vmul.f32 %v1924, 1.442695
  %v1943 = vpow.pop %v1942
  %v1944 = vmul.f32 %v1925, 1.442695
  %v1945 = vpow.pop %v1944
  %v1946 = vmul.f32 %v1926, 1.442695
  %v1947 = vpow.pop %v1946
  %v1948 = vmul.f32 %v1927, 1.442695
  %v1949 = vpow.pop %v1948
  %v1950 = vmul.f32 %v1928, 1.442695
  %v1951 = vpow.pop %v1950
  %v1952 = vmul.f32 %v1929, 1.442695
  %v1953 = vpow.pop %v1952
  %v1954 = vmul.f32 %v1930, 1.442695
  %v1955 = vpow.pop %v1954
  %v1956 = vmul.f32 %v1931, 1.442695
  %v1957 = vpow.pop %v1956
  %v1958 = vmul.f32 %v1932, 1.442695
  %v1959 = vpow.pop %v1958
  %v1960 = vmul.f32 %v1933, 1.442695
  %v1961 = vpow.pop %v1960
  %v1962 = vmul.f32 %v1934, 1.442695
  %v1963 = vpow.pop %v1962
  %v1964 = vmul.f32 %v1935, 1.442695
  %v1965 = vpow.pop %v1964
  %v1966 = vmul.f32 %v1936, 1.442695
  %v1967 = vpow.pop %v1966
  %v1968 = vmul.f32 %v1937, 1.442695
  %v1969 = vpow.pop %v1968
  %v1970 = vadd.f32 %v1939, 1.0
  %v1971 = vadd.f32 %v1941, 1.0
  %v1972 = vadd.f32 %v1943, 1.0
  %v1973 = vadd.f32 %v1945, 1.0
  %v1974 = vadd.f32 %v1947, 1.0
  %v1975 = vadd.f32 %v1949, 1.0
  %v1976 = vadd.f32 %v1951, 1.0
  %v1977 = vadd.f32 %v1953, 1.0
  %v1978 = vadd.f32 %v1955, 1.0
  %v1979 = vadd.f32 %v1957, 1.0
  %v1980 = vadd.f32 %v1959, 1.0
  %v1981 = vadd.f32 %v1961, 1.0
  %v1982 = vadd.f32 %v1963, 1.0
  %v1983 = vadd.f32 %v1965, 1.0
  %v1984 = vadd.f32 %v1967, 1.0
  %v1985 = vadd.f32 %v1969, 1.0
  %v1986 = vrcp.pop %v1970
  %v1987 = vmul.f32 1.0, %v1986
  %v1988 = vrcp.pop %v1971
  %v1989 = vmul.f32 1.0, %v1988
  %v1990 = vrcp.pop %v1972
  %v1991 = vmul.f32 1.0, %v1990
  %v1992 = vrcp.pop %v1973
  %v1993 = vmul.f32 1.0, %v1992
  %v1994 = vrcp.pop %v1974
  %v1995 = vmul.f32 1.0, %v1994
  %v1996 = vrcp.pop %v1975
  %v1997 = vmul.f32 1.0, %v1996
  %v1998 = vrcp.pop %v1976
  %v1999 = vmul.f32 1.0, %v1998
  %v2000 = vrcp.pop %v1977
  %v2001 = vmul.f32 1.0, %v2000
  %v2002 = vrcp.pop %v1978
  %v2003 = vmul.f32 1.0, %v2002
  %v2004 = vrcp.pop %v1979
  %v2005 = vmul.f32 1.0, %v2004
  %v2006 = vrcp.pop %v1980
  %v2007 = vmul.f32 1.0, %v2006
  %v2008 = vrcp.pop %v1981
  %v2009 = vmul.f32 1.0, %v2008
  %v2010 = vrcp.pop %v1982
  %v2011 = vmul.f32 1.0, %v2010
  %v2012 = vrcp.pop %v1983
  %v2013 = vmul.f32 1.0, %v2012
  %v2014 = vrcp.pop %v1984
  %v2015 = vmul.f32 1.0, %v2014
  %v2016 = vrcp.pop %v1985
  %v2017 = vmul.f32 1.0, %v2016
  %vm2018 = vcmp.lt.s32.totalorder %v1921, 5
  %v2019 = vsel %vm2018, %v1987, %v1904
  %v2020 = vsel %vm2018, %v1989, %v1905
  %v2021 = vsel %vm2018, %v1991, %v1906
  %v2022 = vsel %vm2018, %v1993, %v1907
  %v2023 = vsel %vm2018, %v1995, %v1908
  %v2024 = vsel %vm2018, %v1997, %v1909
  %v2025 = vsel %vm2018, %v1999, %v1910
  %v2026 = vsel %vm2018, %v2001, %v1911
  %v2027 = vsel %vm2018, %v2003, %v1912
  %v2028 = vsel %vm2018, %v2005, %v1913
  %v2029 = vsel %vm2018, %v2007, %v1914
  %v2030 = vsel %vm2018, %v2009, %v1915
  %v2031 = vsel %vm2018, %v2011, %v1916
  %v2032 = vsel %vm2018, %v2013, %v1917
  %v2033 = vsel %vm2018, %v2015, %v1918
  %v2034 = vsel %vm2018, %v2017, %v1919
  %2035 = vst [vmem:[%s13] sm:$0xff] %v2019
  %2036 = vst [vmem:[%s13 + $0x8] sm:$0xff] %v2020
  %2037 = vst [vmem:[%s13 + $0x10] sm:$0xff] %v2021
  %2038 = vst [vmem:[%s13 + $0x18] sm:$0xff] %v2022
  %2039 = vst [vmem:[%s13 + $0x20] sm:$0xff] %v2023
  %2040 = vst [vmem:[%s13 + $0x28] sm:$0xff] %v2024
  %2041 = vst [vmem:[%s13 + $0x30] sm:$0xff] %v2025
  %2042 = vst [vmem:[%s13 + $0x38] sm:$0xff] %v2026
  %2043 = vst [vmem:[%s13 + $0x40] sm:$0xff] %v2027
  %2044 = vst [vmem:[%s13 + $0x48] sm:$0xff] %v2028
  %2045 = vst [vmem:[%s13 + $0x50] sm:$0xff] %v2029
  %2046 = vst [vmem:[%s13 + $0x58] sm:$0xff] %v2030
  %2047 = vst [vmem:[%s13 + $0x60] sm:$0xff] %v2031
  %2048 = vst [vmem:[%s13 + $0x68] sm:$0xff] %v2032
  %2049 = vst [vmem:[%s13 + $0x70] sm:$0xff] %v2033
  %2050 = vst [vmem:[%s13 + $0x78] sm:$0xff] %v2034
  // Predicated region
  $region54: #{centernet_forward.1} parent=0 // pred_check
    _
  $region55: #{centernet_forward.1} parent=0 // pred_check_branch
    %2052 = sbr.rel (0) target = $region57
  $region56: #{centernet_forward.1} parent=0 // pred_region
    _
  $region57: #{centernet_forward.1} parent=0 // pred_fallthru
    _
  // Predicated region
  $region58: #{centernet_forward.1} parent=0 // pred_check
    _
  $region59: #{centernet_forward.1} parent=0 // pred_check_branch
    %2054 = sbr.rel (0) target = $region61
  $region60: #{centernet_forward.1} parent=0 // pred_region
    _
  $region61: #{centernet_forward.1} parent=0 // pred_fallthru
    _

</llo_original>
